<compile_context>
chip_gen: v7x
topology: tpu7x:2x2x1
jax: 0.10.0
libtpu: 0.0.40
codegen_flags: <defaults>
</compile_context>

<pallas_src>
import jax
import jax.numpy as jnp
import numpy as np
from jax import lax
from jax.experimental import pallas as pl
from jax.experimental.pallas import tpu as pltpu

_EPS = 1e-5  # nn.BatchNorm2d default eps


# ----------------------------- plain-JAX glue ------------------------------ #

def _bilinear_matrix(out_size: int, in_size: int) -> jnp.ndarray:
    """Row-interp matrix of nn.Upsample(mode='bilinear', align_corners=True)."""
    if out_size == 1:
        src = jnp.zeros((1,), jnp.float32)
    else:
        src = jnp.arange(out_size, dtype=jnp.float32) * (in_size - 1) / (out_size - 1)
    i0 = jnp.clip(jnp.floor(src).astype(jnp.int32), 0, in_size - 1)
    i1 = jnp.clip(i0 + 1, 0, in_size - 1)
    w1 = src - i0.astype(jnp.float32)
    w0 = 1.0 - w1
    eye = jnp.eye(in_size, dtype=jnp.float32)
    return w0[:, None] * eye[i0] + w1[:, None] * eye[i1]


def _pad_rows(mat: jnp.ndarray, out_rows: int, top: int) -> jnp.ndarray:
    """Embed `mat` into `out_rows` rows starting at `top` (F.pad along one axis)."""
    in_rows = mat.shape[0]
    full = jnp.zeros((out_rows, mat.shape[1]), jnp.float32)
    lo, hi = max(0, top), min(out_rows, top + in_rows)
    if hi > lo:
        full = full.at[lo:hi].set(mat[lo - top:hi - top])
    return full


def _banded_conv_mats(w, W):
    """OIHW 3x3 weights -> 3 banded matrices (one per ky), shape (W*Cin, W*Cout).

    B[ky][x_in*Cin + ci, x_out*Cout + co] = w[co, ci, ky, x_in - x_out + 1]
    (zero outside the 3-tap band).  The dx taps + input channels are thereby fused
    into the K dimension of a single MXU matmul per ky; zero-padding along W is
    implicit (out-of-band entries are zero).
    """
    Cout, Cin, _, _ = w.shape
    w_t = jnp.transpose(w.astype(jnp.float32), (2, 3, 1, 0))   # (ky, kx, Cin, Cout)
    xin = jnp.arange(W)[:, None]
    xout = jnp.arange(W)[None, :]
    kx = xin - xout + 1                                        # (W, W)
    valid = ((kx >= 0) & (kx <= 2)).astype(jnp.float32)
    B = w_t[:, jnp.clip(kx, 0, 2)]                             # (3, W, W, Cin, Cout)
    B = B * valid[None, :, :, None, None]
    B = jnp.transpose(B, (0, 1, 3, 2, 4))                      # (3, xin, Cin, xout, Cout)
    return B.reshape(3, W * Cin, W * Cout)


# ------------------------------ Pallas kernel ------------------------------ #

def _up_kernel(x1_ref, x2_ref, rhb_ref, mw_ref,
               w1_ref, p1_ref, g1_ref, be1_ref,
               w2_ref, p2_ref, g2_ref, be2_ref,
               o_ref, pad1, pad2):
    N, Hp, L1 = pad1.shape          # L1 = W2*Ccat (lane-dense concat slab width)
    H2 = Hp - 2
    L2 = pad2.shape[2]              # W2*Cmid
    L3 = o_ref.shape[1]             # W2*Cout
    R = N * H2                      # interior rows (= output rows)

    # ---- bilinear upsample + F.pad + channel concat: two matmuls and one add ----
    # rhb: block-diag height interp (N*H2, N*H1); mw: width interp whose matrix also
    # places x1's channels into their concat slots; x2_ref already carries x2 in its
    # slots (x1 slots zero), so torch.cat is a plain lane-dense add.
    xh = jnp.dot(rhb_ref[...], x1_ref[...], preferred_element_type=jnp.float32)
    cat = x2_ref[...] + jnp.dot(xh, mw_ref[...], preferred_element_type=jnp.float32)

    def conv3x3(pad_ref, interior, w_ref, lout):
        # 3x3 / stride 1 / pad 1 / no bias.  dx taps + input channels are pre-fused
        # into the banded w_ref[ky]; only the dy shift needs a 1-row zero halo.
        lin = pad_ref.shape[2]
        zrow = jnp.zeros((N, 1, lin), jnp.float32)
        pad_ref[:, 0:1, :] = zrow                         # halo-only init (top)
        pad_ref[:, H2 + 1:H2 + 2, :] = zrow               # halo-only init (bottom)
        pad_ref[:, 1:H2 + 1, :] = interior.reshape(N, H2, lin)
        acc = jnp.zeros((R, lout), jnp.float32)
        for ky in range(3):                               # 3 matmuls, K = lin
            lhs = pad_ref[:, ky:ky + H2, :].reshape(R, lin)
            acc = acc + jnp.dot(lhs, w_ref[ky], preferred_element_type=jnp.float32)
        return acc

    def bn_relu(y, p_ref, g_ref, b_ref):
        # One-pass training-mode BatchNorm2d (biased variance) + ReLU, all f32.
        # p_ref = kron(ones(W2,W2), eye(C)) / (N*H2*W2): a tiny matmul that reduces
        # over the x positions sharing a channel AND re-tiles the per-channel result
        # across the lane axis, so no lane<->sublane relayout is needed.
        s1 = jnp.sum(y, axis=0, keepdims=True)
        s2 = jnp.sum(y * y, axis=0, keepdims=True)
        mean = jnp.dot(s1, p_ref[...], preferred_element_type=jnp.float32)
        var = jnp.dot(s2, p_ref[...], preferred_element_type=jnp.float32) - mean * mean
        scale = g_ref[...] * lax.rsqrt(var + _EPS)        # gamma folded into one scale
        return jnp.maximum(y * scale + (b_ref[...] - mean * scale), 0.0)

    h1 = bn_relu(conv3x3(pad1, cat, w1_ref, L2), p1_ref, g1_ref, be1_ref)
    h2 = bn_relu(conv3x3(pad2, h1, w2_ref, L3), p2_ref, g2_ref, be2_ref)
    o_ref[...] = h2                                       # (N*H2, W2*Cout): lane-dense


# -------------------------------- wrapper ---------------------------------- #

def up_forward(x1, x2, params):
    """Up.forward(x1, x2) — x1: (N, C1, H1, W1), x2: (N, C2, H2, W2), NCHW."""
    N, C1, H1, W1 = x1.shape
    N2, C2, H2, W2 = x2.shape
    assert N == N2
    Ccat = C1 + C2
    Hu, Wu = 2 * H1, 2 * W1                          # nn.Upsample(scale_factor=2)
    diffY, diffX = H2 - Hu, W2 - Wu                  # same expressions as the module
    rh = _pad_rows(_bilinear_matrix(Hu, H1), H2, diffY // 2)     # (H2, H1)
    rw = _pad_rows(_bilinear_matrix(Wu, W1), W2, diffX // 2)     # (W2, W1)

    # Height interp as ONE block-diagonal 2-D matmul over the whole batch (no
    # per-batch loop; N is tiny so the block-diag matrix is negligible).
    rhb = jnp.kron(jnp.eye(N, dtype=jnp.float32), rh)            # (N*H2, N*H1)
    # Width interp + placement of x1's channels into their concat slots:
    #   mw[j*C1 + c, ox*Ccat + C2 + c] = rw[ox, j]
    blk = rw.T[:, None, :, None] * jnp.eye(C1, dtype=jnp.float32)[None, :, None, :]
    blk = blk.reshape(W1 * C1, W2, C1)
    mw = jnp.concatenate(
        [jnp.zeros((W1 * C1, W2, C2), jnp.float32), blk], axis=-1
    ).reshape(W1 * C1, W2 * Ccat)

    w1, w2 = params["conv1_w"], params["conv2_w"]
    Cmid, Cout = w1.shape[0], w2.shape[0]
    assert w1.shape == (Cmid, Ccat, 3, 3) and w2.shape == (Cout, Cmid, 3, 3)
    w1b = _banded_conv_mats(w1, W2)                  # (3, W2*Ccat, W2*Cmid)
    w2b = _banded_conv_mats(w2, W2)                  # (3, W2*Cmid, W2*Cout)

    # BatchNorm helpers: per-channel reduce/re-tile matrix and lane-tiled affine.
    m = float(N * H2 * W2)
    p1 = jnp.kron(jnp.ones((W2, W2), jnp.float32), jnp.eye(Cmid, dtype=jnp.float32)) / m
    p2 = jnp.kron(jnp.ones((W2, W2), jnp.float32), jnp.eye(Cout, dtype=jnp.float32)) / m
    g1 = jnp.tile(params["bn1_gamma"].astype(jnp.float32), W2).reshape(1, W2 * Cmid)
    be1 = jnp.tile(params["bn1_beta"].astype(jnp.float32), W2).reshape(1, W2 * Cmid)
    g2 = jnp.tile(params["bn2_gamma"].astype(jnp.float32), W2).reshape(1, W2 * Cout)
    be2 = jnp.tile(params["bn2_beta"].astype(jnp.float32), W2).reshape(1, W2 * Cout)

    # Lane-dense activation slabs: rows = (n, h), lanes = (w, c) with c minor.
    # x2 is pre-placed in its concat channel slots (x1 slots zero) — pure layout
    # plumbing in the wrapper.
    x1p = jnp.transpose(x1, (0, 2, 3, 1)).astype(jnp.float32).reshape(N * H1, W1 * C1)
    x2p = jnp.transpose(x2, (0, 2, 3, 1)).astype(jnp.float32)
    x2p = jnp.pad(x2p, ((0, 0), (0, 0), (0, 0), (0, C1))).reshape(N * H2, W2 * Ccat)

    vmem = pl.BlockSpec(memory_space=pltpu.MemorySpace.VMEM)
    out = pl.pallas_call(
        _up_kernel,
        out_shape=jax.ShapeDtypeStruct((N * H2, W2 * Cout), jnp.float32),
        in_specs=[vmem] * 12,
        out_specs=vmem,
        scratch_shapes=[
            pltpu.VMEM((N, H2 + 2, W2 * Ccat), jnp.float32),   # conv1 row-halo slab
            pltpu.VMEM((N, H2 + 2, W2 * Cmid), jnp.float32),   # conv2 row-halo slab
        ],
        compiler_params=pltpu.CompilerParams(vmem_limit_bytes=32 * 1024 * 1024),
    )(x1p, x2p, rhb, mw, w1b, p1, g1, be1, w2b, p2, g2, be2)

    return jnp.transpose(out.reshape(N, H2, W2, Cout), (0, 3, 1, 2))   # back to NCHW


# ------------------------- pure-JAX reference check ------------------------ #

def up_forward_ref(x1, x2, params):
    N, C1, H1, W1 = x1.shape
    _, C2, H2, W2 = x2.shape
    Hu, Wu = 2 * H1, 2 * W1
    rh = _pad_rows(_bilinear_matrix(Hu, H1), H2, (H2 - Hu) // 2)
    rw = _pad_rows(_bilinear_matrix(Wu, W1), W2, (W2 - Wu) // 2)
    x1u = jnp.einsum("oi,pj,ncij->ncop", rh, rw, x1.astype(jnp.float32))
    x = jnp.concatenate([x2.astype(jnp.float32), x1u], axis=1)

    def conv_bn_relu(x, w, g, b):
        y = lax.conv_general_dilated(x, w.astype(jnp.float32), (1, 1),
                                     ((1, 1), (1, 1)),
                                     dimension_numbers=("NCHW", "OIHW", "NCHW"))
        mean = jnp.mean(y, axis=(0, 2, 3), keepdims=True)
        var = jnp.mean((y - mean) ** 2, axis=(0, 2, 3), keepdims=True)
        y = (y - mean) * lax.rsqrt(var + _EPS) * g.reshape(1, -1, 1, 1) \
            + b.reshape(1, -1, 1, 1)
        return jnp.maximum(y, 0.0)

    x = conv_bn_relu(x, params["conv1_w"], params["bn1_gamma"], params["bn1_beta"])
    x = conv_bn_relu(x, params["conv2_w"], params["bn2_gamma"], params["bn2_beta"])
    return x


if __name__ == "__main__":
    key = jax.random.PRNGKey(0)
    k1, k2, k3, k4, k5, k6, k7, k8 = jax.random.split(key, 8)

    # Up(in_channels=8, out_channels=8, bilinear=True, with_bn=True)
    in_channels, out_channels = 8, 8
    mid_channels = in_channels // 2                 # DoubleConv mid channels
    N, H1, W1 = 2, 8, 8                             # x1: decoder feature (low-res)
    H2, W2 = 16, 16                                 # x2: skip connection (high-res)
    C1 = in_channels // 2
    C2 = in_channels - C1                           # C1 + C2 == in_channels

    x1 = jax.random.normal(k1, (N, C1, H1, W1), jnp.float32)
    x2 = jax.random.normal(k2, (N, C2, H2, W2), jnp.float32)
    params = {
        "conv1_w": 0.1 * jax.random.normal(k3, (mid_channels, in_channels, 3, 3), jnp.float32),
        "bn1_gamma": 1.0 + 0.1 * jax.random.normal(k5, (mid_channels,), jnp.float32),
        "bn1_beta": 0.1 * jax.random.normal(k6, (mid_channels,), jnp.float32),
        "conv2_w": 0.1 * jax.random.normal(k4, (out_channels, mid_channels, 3, 3), jnp.float32),
        "bn2_gamma": 1.0 + 0.1 * jax.random.normal(k7, (out_channels,), jnp.float32),
        "bn2_beta": 0.1 * jax.random.normal(k8, (out_channels,), jnp.float32),
    }

    out = jax.block_until_ready(up_forward(x1, x2, params))
    ref = jax.block_until_ready(up_forward_ref(x1, x2, params))
    assert out.shape == (N, out_channels, H2, W2)
    np.testing.assert_allclose(np.asarray(out), np.asarray(ref), atol=5e-3, rtol=5e-3)
    print("KERNEL_OK")
</pallas_src>

<mosaic_0001>
module attributes {stable_mosaic.version = 11 : i64} {
  func.func @_up_kernel(%arg0: memref<16x32xf32, #tpu.memory_space<vmem>>, %arg1: memref<32x128xf32, #tpu.memory_space<vmem>>, %arg2: memref<32x16xf32, #tpu.memory_space<vmem>>, %arg3: memref<32x128xf32, #tpu.memory_space<vmem>>, %arg4: memref<3x128x64xf32, #tpu.memory_space<vmem>>, %arg5: memref<64x64xf32, #tpu.memory_space<vmem>>, %arg6: memref<1x64xf32, #tpu.memory_space<vmem>>, %arg7: memref<1x64xf32, #tpu.memory_space<vmem>>, %arg8: memref<3x64x128xf32, #tpu.memory_space<vmem>>, %arg9: memref<128x128xf32, #tpu.memory_space<vmem>>, %arg10: memref<1x128xf32, #tpu.memory_space<vmem>>, %arg11: memref<1x128xf32, #tpu.memory_space<vmem>>, %arg12: memref<32x128xf32, #tpu.memory_space<vmem>>, %arg13: memref<2x18x128xf32, #tpu.memory_space<vmem>>, %arg14: memref<2x18x64xf32, #tpu.memory_space<vmem>>) attributes {dimension_semantics = [], scalar_prefetch = 0 : i64, scratch_operands = 2 : i64, tpu.core_type = #tpu.core_type<tc>} {
    %c0 = arith.constant 0 : index
    %c0_0 = arith.constant 0 : index
    %0 = vector.load %arg2[%c0, %c0_0] : memref<32x16xf32, #tpu.memory_space<vmem>>, vector<32x16xf32>
    %c0_1 = arith.constant 0 : index
    %c0_2 = arith.constant 0 : index
    %1 = vector.load %arg0[%c0_1, %c0_2] : memref<16x32xf32, #tpu.memory_space<vmem>>, vector<16x32xf32>
    %cst = arith.constant dense<0.000000e+00> : vector<32x32xf32>
    %2 = tpu.matmul %0, %1, %cst {dimension_numbers = #tpu.dot_dimension_numbers<[1], [0], [0], [1], [0, 0, 1, 1], [], []>} : vector<32x16xf32>, vector<16x32xf32>, vector<32x32xf32> -> vector<32x32xf32>
    %c0_3 = arith.constant 0 : index
    %c0_4 = arith.constant 0 : index
    %3 = vector.load %arg1[%c0_3, %c0_4] : memref<32x128xf32, #tpu.memory_space<vmem>>, vector<32x128xf32>
    %c0_5 = arith.constant 0 : index
    %c0_6 = arith.constant 0 : index
    %4 = vector.load %arg3[%c0_5, %c0_6] : memref<32x128xf32, #tpu.memory_space<vmem>>, vector<32x128xf32>
    %cst_7 = arith.constant dense<0.000000e+00> : vector<32x128xf32>
    %5 = tpu.matmul %2, %4, %cst_7 {dimension_numbers = #tpu.dot_dimension_numbers<[1], [0], [0], [1], [0, 0, 1, 1], [], []>} : vector<32x32xf32>, vector<32x128xf32>, vector<32x128xf32> -> vector<32x128xf32>
    %6 = arith.addf %3, %5 : vector<32x128xf32>
    %cst_8 = arith.constant 0.000000e+00 : f32
    %7 = vector.broadcast %cst_8 : f32 to vector<2x1x128xf32>
    %c0_9 = arith.constant 0 : index
    %c0_10 = arith.constant 0 : index
    %c0_11 = arith.constant 0 : index
    %8 = vector.load %arg13[%c0_9, %c0_10, %c0_11] : memref<2x18x128xf32, #tpu.memory_space<vmem>>, vector<2x1x128xf32>
    tpu.vector_store %arg13[%c0_9, %c0_10, %c0_11], %7 {strides = array<i32>} : memref<2x18x128xf32, #tpu.memory_space<vmem>>, vector<2x1x128xf32>,
    %c0_12 = arith.constant 0 : index
    %c17 = arith.constant 17 : index
    %c0_13 = arith.constant 0 : index
    %9 = vector.load %arg13[%c0_12, %c17, %c0_13] : memref<2x18x128xf32, #tpu.memory_space<vmem>>, vector<2x1x128xf32>
    tpu.vector_store %arg13[%c0_12, %c17, %c0_13], %7 {strides = array<i32>} : memref<2x18x128xf32, #tpu.memory_space<vmem>>, vector<2x1x128xf32>,
    %10 = vector.shape_cast %6 : vector<32x128xf32> to vector<2x16x128xf32>
    %c0_14 = arith.constant 0 : index
    %c1 = arith.constant 1 : index
    %c0_15 = arith.constant 0 : index
    %11 = vector.load %arg13[%c0_14, %c1, %c0_15] : memref<2x18x128xf32, #tpu.memory_space<vmem>>, vector<2x16x128xf32>
    tpu.vector_store %arg13[%c0_14, %c1, %c0_15], %10 {strides = array<i32>} : memref<2x18x128xf32, #tpu.memory_space<vmem>>, vector<2x16x128xf32>,
    %cst_16 = arith.constant 0.000000e+00 : f32
    %12 = vector.broadcast %cst_16 : f32 to vector<32x64xf32>
    %c0_17 = arith.constant 0 : index
    %c0_18 = arith.constant 0 : index
    %c0_19 = arith.constant 0 : index
    %13 = vector.load %arg13[%c0_17, %c0_18, %c0_19] : memref<2x18x128xf32, #tpu.memory_space<vmem>>, vector<2x16x128xf32>
    %14 = vector.shape_cast %13 : vector<2x16x128xf32> to vector<32x128xf32>
    %c0_20 = arith.constant 0 : index
    %c0_21 = arith.constant 0 : index
    %c0_22 = arith.constant 0 : index
    %15 = vector.load %arg4[%c0_20, %c0_21, %c0_22] : memref<3x128x64xf32, #tpu.memory_space<vmem>>, vector<1x128x64xf32>
    %16 = vector.shape_cast %15 : vector<1x128x64xf32> to vector<128x64xf32>
    %cst_23 = arith.constant dense<0.000000e+00> : vector<32x64xf32>
    %17 = tpu.matmul %14, %16, %cst_23 {dimension_numbers = #tpu.dot_dimension_numbers<[1], [0], [0], [1], [0, 0, 1, 1], [], []>} : vector<32x128xf32>, vector<128x64xf32>, vector<32x64xf32> -> vector<32x64xf32>
    %18 = arith.addf %12, %17 : vector<32x64xf32>
    %c0_24 = arith.constant 0 : index
    %c1_25 = arith.constant 1 : index
    %c0_26 = arith.constant 0 : index
    %19 = vector.load %arg13[%c0_24, %c1_25, %c0_26] : memref<2x18x128xf32, #tpu.memory_space<vmem>>, vector<2x16x128xf32>
    %20 = vector.shape_cast %19 : vector<2x16x128xf32> to vector<32x128xf32>
    %c1_27 = arith.constant 1 : index
    %c0_28 = arith.constant 0 : index
    %c0_29 = arith.constant 0 : index
    %21 = vector.load %arg4[%c1_27, %c0_28, %c0_29] : memref<3x128x64xf32, #tpu.memory_space<vmem>>, vector<1x128x64xf32>
    %22 = vector.shape_cast %21 : vector<1x128x64xf32> to vector<128x64xf32>
    %cst_30 = arith.constant dense<0.000000e+00> : vector<32x64xf32>
    %23 = tpu.matmul %20, %22, %cst_30 {dimension_numbers = #tpu.dot_dimension_numbers<[1], [0], [0], [1], [0, 0, 1, 1], [], []>} : vector<32x128xf32>, vector<128x64xf32>, vector<32x64xf32> -> vector<32x64xf32>
    %24 = arith.addf %18, %23 : vector<32x64xf32>
    %c0_31 = arith.constant 0 : index
    %c2 = arith.constant 2 : index
    %c0_32 = arith.constant 0 : index
    %25 = vector.load %arg13[%c0_31, %c2, %c0_32] : memref<2x18x128xf32, #tpu.memory_space<vmem>>, vector<2x16x128xf32>
    %26 = vector.shape_cast %25 : vector<2x16x128xf32> to vector<32x128xf32>
    %c2_33 = arith.constant 2 : index
    %c0_34 = arith.constant 0 : index
    %c0_35 = arith.constant 0 : index
    %27 = vector.load %arg4[%c2_33, %c0_34, %c0_35] : memref<3x128x64xf32, #tpu.memory_space<vmem>>, vector<1x128x64xf32>
    %28 = vector.shape_cast %27 : vector<1x128x64xf32> to vector<128x64xf32>
    %cst_36 = arith.constant dense<0.000000e+00> : vector<32x64xf32>
    %29 = tpu.matmul %26, %28, %cst_36 {dimension_numbers = #tpu.dot_dimension_numbers<[1], [0], [0], [1], [0, 0, 1, 1], [], []>} : vector<32x128xf32>, vector<128x64xf32>, vector<32x64xf32> -> vector<32x64xf32>
    %30 = arith.addf %24, %29 : vector<32x64xf32>
    %cst_37 = arith.constant dense<0.000000e+00> : vector<64xf32>
    %31 = vector.multi_reduction <add>, %30, %cst_37 [0] : vector<32x64xf32> to vector<64xf32>
    %32 = vector.shape_cast %31 : vector<64xf32> to vector<1x64xf32>
    %33 = arith.mulf %30, %30 : vector<32x64xf32>
    %cst_38 = arith.constant dense<0.000000e+00> : vector<64xf32>
    %34 = vector.multi_reduction <add>, %33, %cst_38 [0] : vector<32x64xf32> to vector<64xf32>
    %35 = vector.shape_cast %34 : vector<64xf32> to vector<1x64xf32>
    %c0_39 = arith.constant 0 : index
    %c0_40 = arith.constant 0 : index
    %36 = vector.load %arg5[%c0_39, %c0_40] : memref<64x64xf32, #tpu.memory_space<vmem>>, vector<64x64xf32>
    %cst_41 = arith.constant dense<0.000000e+00> : vector<1x64xf32>
    %37 = tpu.matmul %32, %36, %cst_41 {dimension_numbers = #tpu.dot_dimension_numbers<[1], [0], [0], [1], [0, 0, 1, 1], [], []>} : vector<1x64xf32>, vector<64x64xf32>, vector<1x64xf32> -> vector<1x64xf32>
    %c0_42 = arith.constant 0 : index
    %c0_43 = arith.constant 0 : index
    %38 = vector.load %arg5[%c0_42, %c0_43] : memref<64x64xf32, #tpu.memory_space<vmem>>, vector<64x64xf32>
    %cst_44 = arith.constant dense<0.000000e+00> : vector<1x64xf32>
    %39 = tpu.matmul %35, %38, %cst_44 {dimension_numbers = #tpu.dot_dimension_numbers<[1], [0], [0], [1], [0, 0, 1, 1], [], []>} : vector<1x64xf32>, vector<64x64xf32>, vector<1x64xf32> -> vector<1x64xf32>
    %40 = arith.mulf %37, %37 : vector<1x64xf32>
    %41 = arith.subf %39, %40 : vector<1x64xf32>
    %c0_45 = arith.constant 0 : index
    %c0_46 = arith.constant 0 : index
    %42 = vector.load %arg6[%c0_45, %c0_46] : memref<1x64xf32, #tpu.memory_space<vmem>>, vector<1x64xf32>
    %cst_47 = arith.constant 9.99999974E-6 : f32
    %43 = vector.broadcast %cst_47 : f32 to vector<1x64xf32>
    %44 = arith.addf %41, %43 : vector<1x64xf32>
    %45 = math.rsqrt %44 : vector<1x64xf32>
    %46 = arith.mulf %42, %45 : vector<1x64xf32>
    %47 = vector.broadcast %46 : vector<1x64xf32> to vector<32x64xf32>
    %48 = arith.mulf %30, %47 : vector<32x64xf32>
    %c0_48 = arith.constant 0 : index
    %c0_49 = arith.constant 0 : index
    %49 = vector.load %arg7[%c0_48, %c0_49] : memref<1x64xf32, #tpu.memory_space<vmem>>, vector<1x64xf32>
    %50 = arith.mulf %37, %46 : vector<1x64xf32>
    %51 = arith.subf %49, %50 : vector<1x64xf32>
    %52 = vector.broadcast %51 : vector<1x64xf32> to vector<32x64xf32>
    %53 = arith.addf %48, %52 : vector<32x64xf32>
    %cst_50 = arith.constant 0.000000e+00 : f32
    %54 = vector.broadcast %cst_50 : f32 to vector<32x64xf32>
    %55 = arith.maximumf %53, %54 : vector<32x64xf32>
    %cst_51 = arith.constant 0.000000e+00 : f32
    %56 = vector.broadcast %cst_51 : f32 to vector<2x1x64xf32>
    %c0_52 = arith.constant 0 : index
    %c0_53 = arith.constant 0 : index
    %c0_54 = arith.constant 0 : index
    %57 = vector.load %arg14[%c0_52, %c0_53, %c0_54] : memref<2x18x64xf32, #tpu.memory_space<vmem>>, vector<2x1x64xf32>
    tpu.vector_store %arg14[%c0_52, %c0_53, %c0_54], %56 {strides = array<i32>} : memref<2x18x64xf32, #tpu.memory_space<vmem>>, vector<2x1x64xf32>,
    %c0_55 = arith.constant 0 : index
    %c17_56 = arith.constant 17 : index
    %c0_57 = arith.constant 0 : index
    %58 = vector.load %arg14[%c0_55, %c17_56, %c0_57] : memref<2x18x64xf32, #tpu.memory_space<vmem>>, vector<2x1x64xf32>
    tpu.vector_store %arg14[%c0_55, %c17_56, %c0_57], %56 {strides = array<i32>} : memref<2x18x64xf32, #tpu.memory_space<vmem>>, vector<2x1x64xf32>,
    %59 = vector.shape_cast %55 : vector<32x64xf32> to vector<2x16x64xf32>
    %c0_58 = arith.constant 0 : index
    %c1_59 = arith.constant 1 : index
    %c0_60 = arith.constant 0 : index
    %60 = vector.load %arg14[%c0_58, %c1_59, %c0_60] : memref<2x18x64xf32, #tpu.memory_space<vmem>>, vector<2x16x64xf32>
    tpu.vector_store %arg14[%c0_58, %c1_59, %c0_60], %59 {strides = array<i32>} : memref<2x18x64xf32, #tpu.memory_space<vmem>>, vector<2x16x64xf32>,
    %cst_61 = arith.constant 0.000000e+00 : f32
    %61 = vector.broadcast %cst_61 : f32 to vector<32x128xf32>
    %c0_62 = arith.constant 0 : index
    %c0_63 = arith.constant 0 : index
    %c0_64 = arith.constant 0 : index
    %62 = vector.load %arg14[%c0_62, %c0_63, %c0_64] : memref<2x18x64xf32, #tpu.memory_space<vmem>>, vector<2x16x64xf32>
    %63 = vector.shape_cast %62 : vector<2x16x64xf32> to vector<32x64xf32>
    %c0_65 = arith.constant 0 : index
    %c0_66 = arith.constant 0 : index
    %c0_67 = arith.constant 0 : index
    %64 = vector.load %arg8[%c0_65, %c0_66, %c0_67] : memref<3x64x128xf32, #tpu.memory_space<vmem>>, vector<1x64x128xf32>
    %65 = vector.shape_cast %64 : vector<1x64x128xf32> to vector<64x128xf32>
    %cst_68 = arith.constant dense<0.000000e+00> : vector<32x128xf32>
    %66 = tpu.matmul %63, %65, %cst_68 {dimension_numbers = #tpu.dot_dimension_numbers<[1], [0], [0], [1], [0, 0, 1, 1], [], []>} : vector<32x64xf32>, vector<64x128xf32>, vector<32x128xf32> -> vector<32x128xf32>
    %67 = arith.addf %61, %66 : vector<32x128xf32>
    %c0_69 = arith.constant 0 : index
    %c1_70 = arith.constant 1 : index
    %c0_71 = arith.constant 0 : index
    %68 = vector.load %arg14[%c0_69, %c1_70, %c0_71] : memref<2x18x64xf32, #tpu.memory_space<vmem>>, vector<2x16x64xf32>
    %69 = vector.shape_cast %68 : vector<2x16x64xf32> to vector<32x64xf32>
    %c1_72 = arith.constant 1 : index
    %c0_73 = arith.constant 0 : index
    %c0_74 = arith.constant 0 : index
    %70 = vector.load %arg8[%c1_72, %c0_73, %c0_74] : memref<3x64x128xf32, #tpu.memory_space<vmem>>, vector<1x64x128xf32>
    %71 = vector.shape_cast %70 : vector<1x64x128xf32> to vector<64x128xf32>
    %cst_75 = arith.constant dense<0.000000e+00> : vector<32x128xf32>
    %72 = tpu.matmul %69, %71, %cst_75 {dimension_numbers = #tpu.dot_dimension_numbers<[1], [0], [0], [1], [0, 0, 1, 1], [], []>} : vector<32x64xf32>, vector<64x128xf32>, vector<32x128xf32> -> vector<32x128xf32>
    %73 = arith.addf %67, %72 : vector<32x128xf32>
    %c0_76 = arith.constant 0 : index
    %c2_77 = arith.constant 2 : index
    %c0_78 = arith.constant 0 : index
    %74 = vector.load %arg14[%c0_76, %c2_77, %c0_78] : memref<2x18x64xf32, #tpu.memory_space<vmem>>, vector<2x16x64xf32>
    %75 = vector.shape_cast %74 : vector<2x16x64xf32> to vector<32x64xf32>
    %c2_79 = arith.constant 2 : index
    %c0_80 = arith.constant 0 : index
    %c0_81 = arith.constant 0 : index
    %76 = vector.load %arg8[%c2_79, %c0_80, %c0_81] : memref<3x64x128xf32, #tpu.memory_space<vmem>>, vector<1x64x128xf32>
    %77 = vector.shape_cast %76 : vector<1x64x128xf32> to vector<64x128xf32>
    %cst_82 = arith.constant dense<0.000000e+00> : vector<32x128xf32>
    %78 = tpu.matmul %75, %77, %cst_82 {dimension_numbers = #tpu.dot_dimension_numbers<[1], [0], [0], [1], [0, 0, 1, 1], [], []>} : vector<32x64xf32>, vector<64x128xf32>, vector<32x128xf32> -> vector<32x128xf32>
    %79 = arith.addf %73, %78 : vector<32x128xf32>
    %cst_83 = arith.constant dense<0.000000e+00> : vector<128xf32>
    %80 = vector.multi_reduction <add>, %79, %cst_83 [0] : vector<32x128xf32> to vector<128xf32>
    %81 = vector.shape_cast %80 : vector<128xf32> to vector<1x128xf32>
    %82 = arith.mulf %79, %79 : vector<32x128xf32>
    %cst_84 = arith.constant dense<0.000000e+00> : vector<128xf32>
    %83 = vector.multi_reduction <add>, %82, %cst_84 [0] : vector<32x128xf32> to vector<128xf32>
    %84 = vector.shape_cast %83 : vector<128xf32> to vector<1x128xf32>
    %c0_85 = arith.constant 0 : index
    %c0_86 = arith.constant 0 : index
    %85 = vector.load %arg9[%c0_85, %c0_86] : memref<128x128xf32, #tpu.memory_space<vmem>>, vector<128x128xf32>
    %cst_87 = arith.constant dense<0.000000e+00> : vector<1x128xf32>
    %86 = tpu.matmul %81, %85, %cst_87 {dimension_numbers = #tpu.dot_dimension_numbers<[1], [0], [0], [1], [0, 0, 1, 1], [], []>} : vector<1x128xf32>, vector<128x128xf32>, vector<1x128xf32> -> vector<1x128xf32>
    %c0_88 = arith.constant 0 : index
    %c0_89 = arith.constant 0 : index
    %87 = vector.load %arg9[%c0_88, %c0_89] : memref<128x128xf32, #tpu.memory_space<vmem>>, vector<128x128xf32>
    %cst_90 = arith.constant dense<0.000000e+00> : vector<1x128xf32>
    %88 = tpu.matmul %84, %87, %cst_90 {dimension_numbers = #tpu.dot_dimension_numbers<[1], [0], [0], [1], [0, 0, 1, 1], [], []>} : vector<1x128xf32>, vector<128x128xf32>, vector<1x128xf32> -> vector<1x128xf32>
    %89 = arith.mulf %86, %86 : vector<1x128xf32>
    %90 = arith.subf %88, %89 : vector<1x128xf32>
    %c0_91 = arith.constant 0 : index
    %c0_92 = arith.constant 0 : index
    %91 = vector.load %arg10[%c0_91, %c0_92] : memref<1x128xf32, #tpu.memory_space<vmem>>, vector<1x128xf32>
    %cst_93 = arith.constant 9.99999974E-6 : f32
    %92 = vector.broadcast %cst_93 : f32 to vector<1x128xf32>
    %93 = arith.addf %90, %92 : vector<1x128xf32>
    %94 = math.rsqrt %93 : vector<1x128xf32>
    %95 = arith.mulf %91, %94 : vector<1x128xf32>
    %96 = vector.broadcast %95 : vector<1x128xf32> to vector<32x128xf32>
    %97 = arith.mulf %79, %96 : vector<32x128xf32>
    %c0_94 = arith.constant 0 : index
    %c0_95 = arith.constant 0 : index
    %98 = vector.load %arg11[%c0_94, %c0_95] : memref<1x128xf32, #tpu.memory_space<vmem>>, vector<1x128xf32>
    %99 = arith.mulf %86, %95 : vector<1x128xf32>
    %100 = arith.subf %98, %99 : vector<1x128xf32>
    %101 = vector.broadcast %100 : vector<1x128xf32> to vector<32x128xf32>
    %102 = arith.addf %97, %101 : vector<32x128xf32>
    %cst_96 = arith.constant 0.000000e+00 : f32
    %103 = vector.broadcast %cst_96 : f32 to vector<32x128xf32>
    %104 = arith.maximumf %102, %103 : vector<32x128xf32>
    %c0_97 = arith.constant 0 : index
    %c0_98 = arith.constant 0 : index
    %105 = vector.load %arg12[%c0_97, %c0_98] : memref<32x128xf32, #tpu.memory_space<vmem>>, vector<32x128xf32>
    tpu.vector_store %arg12[%c0_97, %c0_98], %104 {strides = array<i32>} : memref<32x128xf32, #tpu.memory_space<vmem>>, vector<32x128xf32>,
    return
  }
}

</mosaic_0001>

<llo_original>
// kernel: tpu_custom_call.1
$region0: #{tpu_custom_call.1}
  #allocation0 [shape = 'u32[]', space=smem, size = 0x4, offset = 0x4, fixed_abs, tag = 'smem constant byte address 0x4 - core index']
  #allocation1 [shape = 'u32[144,128]{1,0:T(1,128)}', space=vmem, size = 0x12000, scoped, tag = 'internal scratch']
  #allocation2 [shape = 'f32[2,18,128]{2,1,0:T(8,128)}', space=vmem, size = 0x6000, scoped, tag = 'scratch operand']
  #allocation3 [shape = 'f32[2,18,64]{2,1,0:T(8,128)}', space=vmem, size = 0x6000, scoped, tag = 'scratch operand']
  %s0 = inlined_call_operand.vmem [shape: f32[16,32], index: 0, kind: input, shape index: {}]
  %s1 = inlined_call_operand.vmem [shape: f32[32,128], index: 1, kind: input, shape index: {}]
  %s2 = inlined_call_operand.vmem [shape: f32[32,16], index: 2, kind: input, shape index: {}]
  %s3 = inlined_call_operand.vmem [shape: f32[32,128], index: 3, kind: input, shape index: {}]
  %s4 = inlined_call_operand.vmem [shape: f32[3,128,64], index: 4, kind: input, shape index: {}]
  %s5 = inlined_call_operand.vmem [shape: f32[64,64], index: 5, kind: input, shape index: {}]
  %s6 = inlined_call_operand.vmem [shape: f32[1,64], index: 6, kind: input, shape index: {}]
  %s7 = inlined_call_operand.vmem [shape: f32[1,64], index: 7, kind: input, shape index: {}]
  %s8 = inlined_call_operand.vmem [shape: f32[3,64,128], index: 8, kind: input, shape index: {}]
  %s9 = inlined_call_operand.vmem [shape: f32[128,128], index: 9, kind: input, shape index: {}]
  %s10 = inlined_call_operand.vmem [shape: f32[1,128], index: 10, kind: input, shape index: {}]
  %s11 = inlined_call_operand.vmem [shape: f32[1,128], index: 11, kind: input, shape index: {}]
  %s12 = inlined_call_operand.hbm [shape: f32[32,128], index: 12, kind: output, shape index: {}]
  %s13 = sld [smem:[#allocation0]]
  $region58: #{tpu_custom_call.1} parent=0
    _
  %s15 = ssub.s32 1, %s13
  %s16 = scalar_select 0, %s15, %s13
  $region1: #{tpu_custom_call.1} parent=0
    #allocation4 [shape = 'u8[16384]{0}', space=vmem, size = 0x4000, scoped, tag = 'output window, operand 0, single buffered']
    #allocation5 [shape = 's32[1]{0}', space=sflag, size = 0x4, scoped, tag = 'scoped memory for tpu_custom_call.1']
    %17 = vsyncpa [#allocation5], 0
    // Predicated region
    $region2: #{tpu_custom_call.1} parent=1 // pred_check
      _
    $region3: #{tpu_custom_call.1} parent=1 // pred_check_branch
      %19 = sbr.rel (0) target = $region5
    $region4: #{tpu_custom_call.1} parent=1 // pred_region
      _
    $region5: #{tpu_custom_call.1} parent=1 // pred_fallthru
      _
    // Predicated region
    $region6: #{tpu_custom_call.1} parent=1 // pred_check
      _
    $region7: #{tpu_custom_call.1} parent=1 // pred_check_branch
      %21 = sbr.rel (0) target = $region9
    $region8: #{tpu_custom_call.1} parent=1 // pred_region
      _
    $region9: #{tpu_custom_call.1} parent=1 // pred_fallthru
      _
    // Predicated region
    $region10: #{tpu_custom_call.1} parent=1 // pred_check
      _
    $region11: #{tpu_custom_call.1} parent=1 // pred_check_branch
      %23 = sbr.rel (0) target = $region13
    $region12: #{tpu_custom_call.1} parent=1 // pred_region
      _
    $region13: #{tpu_custom_call.1} parent=1 // pred_fallthru
      _
    // Predicated region
    $region14: #{tpu_custom_call.1} parent=1 // pred_check
      _
    $region15: #{tpu_custom_call.1} parent=1 // pred_check_branch
      %25 = sbr.rel (0) target = $region17
    $region16: #{tpu_custom_call.1} parent=1 // pred_region
      _
    $region17: #{tpu_custom_call.1} parent=1 // pred_fallthru
      _
    // Predicated region
    $region18: #{tpu_custom_call.1} parent=1 // pred_check
      _
    $region19: #{tpu_custom_call.1} parent=1 // pred_check_branch
      %27 = sbr.rel (0) target = $region21
    $region20: #{tpu_custom_call.1} parent=1 // pred_region
      _
    $region21: #{tpu_custom_call.1} parent=1 // pred_fallthru
      _
    // Predicated region
    $region22: #{tpu_custom_call.1} parent=1 // pred_check
      _
    $region23: #{tpu_custom_call.1} parent=1 // pred_check_branch
      %29 = sbr.rel (0) target = $region25
    $region24: #{tpu_custom_call.1} parent=1 // pred_region
      _
    $region25: #{tpu_custom_call.1} parent=1 // pred_fallthru
      _
    // Predicated region
    $region26: #{tpu_custom_call.1} parent=1 // pred_check
      _
    $region27: #{tpu_custom_call.1} parent=1 // pred_check_branch
      %31 = sbr.rel (0) target = $region29
    $region28: #{tpu_custom_call.1} parent=1 // pred_region
      _
    $region29: #{tpu_custom_call.1} parent=1 // pred_fallthru
      _
    // Predicated region
    $region30: #{tpu_custom_call.1} parent=1 // pred_check
      _
    $region31: #{tpu_custom_call.1} parent=1 // pred_check_branch
      %33 = sbr.rel (0) target = $region33
    $region32: #{tpu_custom_call.1} parent=1 // pred_region
      _
    $region33: #{tpu_custom_call.1} parent=1 // pred_fallthru
      _
    // Predicated region
    $region34: #{tpu_custom_call.1} parent=1 // pred_check
      _
    $region35: #{tpu_custom_call.1} parent=1 // pred_check_branch
      %35 = sbr.rel (0) target = $region37
    $region36: #{tpu_custom_call.1} parent=1 // pred_region
      _
    $region37: #{tpu_custom_call.1} parent=1 // pred_fallthru
      _
    // Predicated region
    $region38: #{tpu_custom_call.1} parent=1 // pred_check
      _
    $region39: #{tpu_custom_call.1} parent=1 // pred_check_branch
      %37 = sbr.rel (0) target = $region41
    $region40: #{tpu_custom_call.1} parent=1 // pred_region
      _
    $region41: #{tpu_custom_call.1} parent=1 // pred_fallthru
      _
    // Predicated region
    $region42: #{tpu_custom_call.1} parent=1 // pred_check
      _
    $region43: #{tpu_custom_call.1} parent=1 // pred_check_branch
      %39 = sbr.rel (0) target = $region45
    $region44: #{tpu_custom_call.1} parent=1 // pred_region
      _
    $region45: #{tpu_custom_call.1} parent=1 // pred_fallthru
      _
    // Predicated region
    $region46: #{tpu_custom_call.1} parent=1 // pred_check
      _
    $region47: #{tpu_custom_call.1} parent=1 // pred_check_branch
      %41 = sbr.rel (0) target = $region49
    $region48: #{tpu_custom_call.1} parent=1 // pred_region
      _
    $region49: #{tpu_custom_call.1} parent=1 // pred_fallthru
      _
    %v42 = vld [vmem:[%s2] sm:$0xff]
    %v43 = vld [vmem:[%s2 + $0x8] sm:$0xff]
    %v44 = vld [vmem:[%s2 + $0x10] sm:$0xff]
    %v45 = vld [vmem:[%s2 + $0x18] sm:$0xff]
    %v46 = vld [vmem:[%s0] sm:$0xff]
    %v47 = vld [vmem:[%s0 + $0x8] sm:$0xff]
    %vm48 = vcmask 130048
    %v50 = vsel %vm48, %v42, 0
    %v53 = vsel %vm48, %v43, 0
    %v56 = vsel %vm48, %v44, 0
    %v59 = vsel %vm48, %v45, 0
    %61 = vmatprep.subr.mxu0 0.0
    %62 = vmatpush1.msra.mxu0 %v46
    %63 = vmatprep.subr.mxu0 0.0
    %64 = vmatpush1.msra.mxu0 %v47
    %65 = vmatprep.subr.mxu0 0.0
    %66 = vmatpush1.msra.mxu0 0.0
    %67 = vmatprep.subr.mxu0 0.0
    %68 = vmatpush1.msra.mxu0 0.0
    %69 = vmatprep.subr.mxu0 0.0
    %70 = vmatpush1.msra.mxu0 0.0
    %71 = vmatprep.subr.mxu0 0.0
    %72 = vmatpush1.msra.mxu0 0.0
    %73 = vmatprep.subr.mxu0 0.0
    %74 = vmatpush1.msra.mxu0 0.0
    %75 = vmatprep.subr.mxu0 0.0
    %76 = vmatpush1.msra.mxu0 0.0
    %77 = vmatprep.subr.mxu0 0.0
    %78 = vmatpush1.msra.mxu0 0.0
    %79 = vmatprep.subr.mxu0 0.0
    %80 = vmatpush1.msra.mxu0 0.0
    %81 = vmatprep.subr.mxu0 0.0
    %82 = vmatpush1.msra.mxu0 0.0
    %83 = vmatprep.subr.mxu0 0.0
    %84 = vmatpush1.msra.mxu0 0.0
    %85 = vmatprep.subr.mxu0 0.0
    %86 = vmatpush1.msra.mxu0 0.0
    %87 = vmatprep.subr.mxu0 0.0
    %88 = vmatpush1.msra.mxu0 0.0
    %89 = vmatprep.subr.mxu0 0.0
    %90 = vmatpush1.msra.mxu0 0.0
    %91 = vmatprep.subr.mxu0 0.0
    %92 = vmatpush1.msra.mxu0 0.0
    %93 = vmatprep.subr.mxu0 0.0
    %94 = vmatpush1.msra.mxu0 0.0
    %95 = vmatprep.subr.mxu0 0.0
    %96 = vmatpush1.msra.mxu0 0.0
    %97 = vmatprep.subr.mxu0 0.0
    %98 = vmatpush1.msra.mxu0 0.0
    %99 = vmatprep.subr.mxu0 0.0
    %100 = vmatpush1.msra.mxu0 0.0
    %101 = vmatprep.subr.mxu0 0.0
    %102 = vmatpush1.msra.mxu0 0.0
    %103 = vmatprep.subr.mxu0 0.0
    %104 = vmatpush1.msra.mxu0 0.0
    %105 = vmatprep.subr.mxu0 0.0
    %106 = vmatpush1.msra.mxu0 0.0
    %107 = vmatprep.subr.mxu0 0.0
    %108 = vmatpush1.msra.mxu0 0.0
    %109 = vmatprep.subr.mxu0 0.0
    %110 = vmatpush1.msra.mxu0 0.0
    %111 = vmatprep.subr.mxu0 0.0
    %112 = vmatpush1.msra.mxu0 0.0
    %113 = vmatprep.subr.mxu0 0.0
    %114 = vmatpush1.msra.mxu0 0.0
    %115 = vmatprep.subr.mxu0 0.0
    %116 = vmatpush1.msra.mxu0 0.0
    %117 = vmatprep.subr.mxu0 0.0
    %118 = vmatpush1.msra.mxu0 0.0
    %119 = vmatprep.subr.mxu0 0.0
    %120 = vmatpush1.msra.mxu0 0.0
    %121 = vmatprep.subr.mxu0 0.0
    %122 = vmatpush1.msra.mxu0 0.0
    %123 = vmatprep.subr.mxu0 0.0
    %124 = vmatpush1.msra.mxu0 0.0
    %125 = vmatprep.mubr.f32.mxu0 0.0
    %126 = vmatmul.mubr.f32.gmra.mrb[0].mxu0 %v50
    %v127 = vpop.f32.mrb[0].mxu0
    %v128 = vadd.f32 0.0, %v127
    %v129 = vpop.f32.mrb[0].mxu0
    %130 = vmatprep.mubr.f32.mxu0 0.0
    %131 = vmatmul.mubr.f32.gmra.mrb[0].mxu0 %v53
    %v132 = vpop.f32.mrb[0].mxu0
    %v133 = vadd.f32 0.0, %v132
    %v134 = vpop.f32.mrb[0].mxu0
    %135 = vmatprep.mubr.f32.mxu0 0.0
    %136 = vmatmul.mubr.f32.gmra.mrb[0].mxu0 %v56
    %v137 = vpop.f32.mrb[0].mxu0
    %v138 = vadd.f32 0.0, %v137
    %v139 = vpop.f32.mrb[0].mxu0
    %140 = vmatprep.mubr.f32.mxu0 0.0
    %141 = vmatmul.mubr.f32.gmra.mrb[0].mxu0 %v59
    %v142 = vpop.f32.mrb[0].mxu0
    %v143 = vadd.f32 0.0, %v142
    %v144 = vpop.f32.mrb[0].mxu0
    %145 = vdwg.mxu0
    %v146 = vld [vmem:[%s1] sm:$0xff]
    %v147 = vld [vmem:[%s1 + $0x8] sm:$0xff]
    %v148 = vld [vmem:[%s1 + $0x10] sm:$0xff]
    %v149 = vld [vmem:[%s1 + $0x18] sm:$0xff]
    %v150 = vld [vmem:[%s3] sm:$0xff]
    %v151 = vld [vmem:[%s3 + $0x8] sm:$0xff]
    %v152 = vld [vmem:[%s3 + $0x10] sm:$0xff]
    %v153 = vld [vmem:[%s3 + $0x18] sm:$0xff]
    %vm154 = vcmask 261120
    %v156 = vsel %vm154, %v128, 0
    %v159 = vsel %vm154, %v133, 0
    %v162 = vsel %vm154, %v138, 0
    %v165 = vsel %vm154, %v143, 0
    %167 = vmatprep.subr.mxu0 0.0
    %168 = vmatpush1.msra.mxu0 %v150
    %169 = vmatprep.subr.mxu0 0.0
    %170 = vmatpush1.msra.mxu0 %v151
    %171 = vmatprep.subr.mxu0 0.0
    %172 = vmatpush1.msra.mxu0 %v152
    %173 = vmatprep.subr.mxu0 0.0
    %174 = vmatpush1.msra.mxu0 %v153
    %175 = vmatprep.subr.mxu0 0.0
    %176 = vmatpush1.msra.mxu0 0.0
    %177 = vmatprep.subr.mxu0 0.0
    %178 = vmatpush1.msra.mxu0 0.0
    %179 = vmatprep.subr.mxu0 0.0
    %180 = vmatpush1.msra.mxu0 0.0
    %181 = vmatprep.subr.mxu0 0.0
    %182 = vmatpush1.msra.mxu0 0.0
    %183 = vmatprep.subr.mxu0 0.0
    %184 = vmatpush1.msra.mxu0 0.0
    %185 = vmatprep.subr.mxu0 0.0
    %186 = vmatpush1.msra.mxu0 0.0
    %187 = vmatprep.subr.mxu0 0.0
    %188 = vmatpush1.msra.mxu0 0.0
    %189 = vmatprep.subr.mxu0 0.0
    %190 = vmatpush1.msra.mxu0 0.0
    %191 = vmatprep.subr.mxu0 0.0
    %192 = vmatpush1.msra.mxu0 0.0
    %193 = vmatprep.subr.mxu0 0.0
    %194 = vmatpush1.msra.mxu0 0.0
    %195 = vmatprep.subr.mxu0 0.0
    %196 = vmatpush1.msra.mxu0 0.0
    %197 = vmatprep.subr.mxu0 0.0
    %198 = vmatpush1.msra.mxu0 0.0
    %199 = vmatprep.subr.mxu0 0.0
    %200 = vmatpush1.msra.mxu0 0.0
    %201 = vmatprep.subr.mxu0 0.0
    %202 = vmatpush1.msra.mxu0 0.0
    %203 = vmatprep.subr.mxu0 0.0
    %204 = vmatpush1.msra.mxu0 0.0
    %205 = vmatprep.subr.mxu0 0.0
    %206 = vmatpush1.msra.mxu0 0.0
    %207 = vmatprep.subr.mxu0 0.0
    %208 = vmatpush1.msra.mxu0 0.0
    %209 = vmatprep.subr.mxu0 0.0
    %210 = vmatpush1.msra.mxu0 0.0
    %211 = vmatprep.subr.mxu0 0.0
    %212 = vmatpush1.msra.mxu0 0.0
    %213 = vmatprep.subr.mxu0 0.0
    %214 = vmatpush1.msra.mxu0 0.0
    %215 = vmatprep.subr.mxu0 0.0
    %216 = vmatpush1.msra.mxu0 0.0
    %217 = vmatprep.subr.mxu0 0.0
    %218 = vmatpush1.msra.mxu0 0.0
    %219 = vmatprep.subr.mxu0 0.0
    %220 = vmatpush1.msra.mxu0 0.0
    %221 = vmatprep.subr.mxu0 0.0
    %222 = vmatpush1.msra.mxu0 0.0
    %223 = vmatprep.subr.mxu0 0.0
    %224 = vmatpush1.msra.mxu0 0.0
    %225 = vmatprep.subr.mxu0 0.0
    %226 = vmatpush1.msra.mxu0 0.0
    %227 = vmatprep.subr.mxu0 0.0
    %228 = vmatpush1.msra.mxu0 0.0
    %229 = vmatprep.subr.mxu0 0.0
    %230 = vmatpush1.msra.mxu0 0.0
    %231 = vmatprep.mubr.f32.mxu0 0.0
    %232 = vmatmul.mubr.f32.gmra.mrb[0].mxu0 %v156
    %v233 = vpop.f32.mrb[0].mxu0
    %v234 = vadd.f32 0.0, %v233
    %v235 = vpop.f32.mrb[0].mxu0
    %236 = vmatprep.mubr.f32.mxu0 0.0
    %237 = vmatmul.mubr.f32.gmra.mrb[0].mxu0 %v159
    %v238 = vpop.f32.mrb[0].mxu0
    %v239 = vadd.f32 0.0, %v238
    %v240 = vpop.f32.mrb[0].mxu0
    %241 = vmatprep.mubr.f32.mxu0 0.0
    %242 = vmatmul.mubr.f32.gmra.mrb[0].mxu0 %v162
    %v243 = vpop.f32.mrb[0].mxu0
    %v244 = vadd.f32 0.0, %v243
    %v245 = vpop.f32.mrb[0].mxu0
    %246 = vmatprep.mubr.f32.mxu0 0.0
    %247 = vmatmul.mubr.f32.gmra.mrb[0].mxu0 %v165
    %v248 = vpop.f32.mrb[0].mxu0
    %v249 = vadd.f32 0.0, %v248
    %v250 = vpop.f32.mrb[0].mxu0
    %251 = vdwg.mxu0
    %v252 = vadd.f32 %v146, %v234
    %v253 = vadd.f32 %v147, %v239
    %v254 = vadd.f32 %v148, %v244
    %v255 = vadd.f32 %v149, %v249
    %256 = vst [vmem:[#allocation2] sm:$0x1] 0.0
    %257 = vst [vmem:[#allocation2 + $0x18] sm:$0x1] 0.0
    %258 = vst [vmem:[#allocation2 + $0x11] sm:$0x1] 0.0
    %259 = vst [vmem:[#allocation2 + $0x29] sm:$0x1] 0.0
    %260 = vst [vmem:[#allocation2 + $0x1] sm:$0xff] %v252
    %261 = vst [vmem:[#allocation2 + $0x9] sm:$0xff] %v253
    %262 = vst [vmem:[#allocation2 + $0x19] sm:$0xff] %v254
    %263 = vst [vmem:[#allocation2 + $0x21] sm:$0xff] %v255
    %v264 = vld [vmem:[#allocation2] sm:$0xff]
    %v265 = vld [vmem:[#allocation2 + $0x8] sm:$0xff]
    %v266 = vld [vmem:[#allocation2 + $0x18] sm:$0xff]
    %v267 = vld [vmem:[#allocation2 + $0x20] sm:$0xff]
    %v268 = vld [vmem:[%s4] sm:$0xff]
    %v269 = vld [vmem:[%s4 + $0x8] sm:$0xff]
    %v270 = vld [vmem:[%s4 + $0x10] sm:$0xff]
    %v271 = vld [vmem:[%s4 + $0x18] sm:$0xff]
    %v272 = vld [vmem:[%s4 + $0x20] sm:$0xff]
    %v273 = vld [vmem:[%s4 + $0x28] sm:$0xff]
    %v274 = vld [vmem:[%s4 + $0x30] sm:$0xff]
    %v275 = vld [vmem:[%s4 + $0x38] sm:$0xff]
    %v276 = vld [vmem:[%s4 + $0x40] sm:$0xff]
    %v277 = vld [vmem:[%s4 + $0x48] sm:$0xff]
    %v278 = vld [vmem:[%s4 + $0x50] sm:$0xff]
    %v279 = vld [vmem:[%s4 + $0x58] sm:$0xff]
    %v280 = vld [vmem:[%s4 + $0x60] sm:$0xff]
    %v281 = vld [vmem:[%s4 + $0x68] sm:$0xff]
    %v282 = vld [vmem:[%s4 + $0x70] sm:$0xff]
    %v283 = vld [vmem:[%s4 + $0x78] sm:$0xff]
    %v284 = vld [vmem:[#allocation2 + $0x1] sm:$0xff]
    %v285 = vld [vmem:[#allocation2 + $0x9] sm:$0xff]
    %v286 = vld [vmem:[#allocation2 + $0x19] sm:$0xff]
    %v287 = vld [vmem:[#allocation2 + $0x21] sm:$0xff]
    %s288 = scalar_lea.vmem %s4, 128
    %v289 = vld [vmem:[%s288] sm:$0xff]
    %v290 = vld [vmem:[%s288 + $0x8] sm:$0xff]
    %v291 = vld [vmem:[%s288 + $0x10] sm:$0xff]
    %v292 = vld [vmem:[%s288 + $0x18] sm:$0xff]
    %v293 = vld [vmem:[%s288 + $0x20] sm:$0xff]
    %v294 = vld [vmem:[%s288 + $0x28] sm:$0xff]
    %v295 = vld [vmem:[%s288 + $0x30] sm:$0xff]
    %v296 = vld [vmem:[%s288 + $0x38] sm:$0xff]
    %v297 = vld [vmem:[%s288 + $0x40] sm:$0xff]
    %v298 = vld [vmem:[%s288 + $0x48] sm:$0xff]
    %v299 = vld [vmem:[%s288 + $0x50] sm:$0xff]
    %v300 = vld [vmem:[%s288 + $0x58] sm:$0xff]
    %v301 = vld [vmem:[%s288 + $0x60] sm:$0xff]
    %v302 = vld [vmem:[%s288 + $0x68] sm:$0xff]
    %v303 = vld [vmem:[%s288 + $0x70] sm:$0xff]
    %v304 = vld [vmem:[%s288 + $0x78] sm:$0xff]
    %305 = vmatprep.subr.mxu0 0.0
    %306 = vmatpush1.msra.mxu0 %v289
    %307 = vmatprep.subr.mxu0 0.0
    %308 = vmatpush1.msra.mxu0 %v290
    %309 = vmatprep.subr.mxu0 0.0
    %310 = vmatpush1.msra.mxu0 %v291
    %311 = vmatprep.subr.mxu0 0.0
    %312 = vmatpush1.msra.mxu0 %v292
    %313 = vmatprep.subr.mxu0 0.0
    %314 = vmatpush1.msra.mxu0 %v293
    %315 = vmatprep.subr.mxu0 0.0
    %316 = vmatpush1.msra.mxu0 %v294
    %317 = vmatprep.subr.mxu0 0.0
    %318 = vmatpush1.msra.mxu0 %v295
    %319 = vmatprep.subr.mxu0 0.0
    %320 = vmatpush1.msra.mxu0 %v296
    %321 = vmatprep.subr.mxu0 0.0
    %322 = vmatpush1.msra.mxu0 %v297
    %323 = vmatprep.subr.mxu0 0.0
    %324 = vmatpush1.msra.mxu0 %v298
    %325 = vmatprep.subr.mxu0 0.0
    %326 = vmatpush1.msra.mxu0 %v299
    %327 = vmatprep.subr.mxu0 0.0
    %328 = vmatpush1.msra.mxu0 %v300
    %329 = vmatprep.subr.mxu0 0.0
    %330 = vmatpush1.msra.mxu0 %v301
    %331 = vmatprep.subr.mxu0 0.0
    %332 = vmatpush1.msra.mxu0 %v302
    %333 = vmatprep.subr.mxu0 0.0
    %334 = vmatpush1.msra.mxu0 %v303
    %335 = vmatprep.subr.mxu0 0.0
    %336 = vmatpush1.msra.mxu0 %v304
    %337 = vmatprep.subr.mxu0 0.0
    %338 = vmatpush1.msra.mxu0 0.0
    %339 = vmatprep.subr.mxu0 0.0
    %340 = vmatpush1.msra.mxu0 0.0
    %341 = vmatprep.subr.mxu0 0.0
    %342 = vmatpush1.msra.mxu0 0.0
    %343 = vmatprep.subr.mxu0 0.0
    %344 = vmatpush1.msra.mxu0 0.0
    %345 = vmatprep.subr.mxu0 0.0
    %346 = vmatpush1.msra.mxu0 0.0
    %347 = vmatprep.subr.mxu0 0.0
    %348 = vmatpush1.msra.mxu0 0.0
    %349 = vmatprep.subr.mxu0 0.0
    %350 = vmatpush1.msra.mxu0 0.0
    %351 = vmatprep.subr.mxu0 0.0
    %352 = vmatpush1.msra.mxu0 0.0
    %353 = vmatprep.subr.mxu0 0.0
    %354 = vmatpush1.msra.mxu0 0.0
    %355 = vmatprep.subr.mxu0 0.0
    %356 = vmatpush1.msra.mxu0 0.0
    %357 = vmatprep.subr.mxu0 0.0
    %358 = vmatpush1.msra.mxu0 0.0
    %359 = vmatprep.subr.mxu0 0.0
    %360 = vmatpush1.msra.mxu0 0.0
    %361 = vmatprep.subr.mxu0 0.0
    %362 = vmatpush1.msra.mxu0 0.0
    %363 = vmatprep.subr.mxu0 0.0
    %364 = vmatpush1.msra.mxu0 0.0
    %365 = vmatprep.subr.mxu0 0.0
    %366 = vmatpush1.msra.mxu0 0.0
    %367 = vmatprep.subr.mxu0 0.0
    %368 = vmatpush1.msra.mxu0 0.0
    %369 = vmatprep.mubr.f32.mxu0 0.0
    %370 = vmatmul.mubr.f32.gmra.mrb[0].mxu0 %v284
    %v371 = vpop.f32.mrb[0].mxu0
    %v372 = vadd.f32 0.0, %v371
    %v373 = vpop.f32.mrb[0].mxu0
    %374 = vmatprep.mubr.f32.mxu0 0.0
    %375 = vmatmul.mubr.f32.gmra.mrb[0].mxu0 %v285
    %v376 = vpop.f32.mrb[0].mxu0
    %v377 = vadd.f32 0.0, %v376
    %v378 = vpop.f32.mrb[0].mxu0
    %379 = vmatprep.mubr.f32.mxu0 0.0
    %380 = vmatmul.mubr.f32.gmra.mrb[0].mxu0 %v286
    %v381 = vpop.f32.mrb[0].mxu0
    %v382 = vadd.f32 0.0, %v381
    %v383 = vpop.f32.mrb[0].mxu0
    %384 = vmatprep.mubr.f32.mxu0 0.0
    %385 = vmatmul.mubr.f32.gmra.mrb[0].mxu0 %v287
    %v386 = vpop.f32.mrb[0].mxu0
    %v387 = vadd.f32 0.0, %v386
    %v388 = vpop.f32.mrb[0].mxu0
    %389 = vdwg.mxu0
    %390 = vmatprep.subr.mxu0 0.0
    %391 = vmatpush1.msra.mxu0 %v268
    %392 = vmatprep.subr.mxu0 0.0
    %393 = vmatpush1.msra.mxu0 %v269
    %394 = vmatprep.subr.mxu0 0.0
    %395 = vmatpush1.msra.mxu0 %v270
    %396 = vmatprep.subr.mxu0 0.0
    %397 = vmatpush1.msra.mxu0 %v271
    %398 = vmatprep.subr.mxu0 0.0
    %399 = vmatpush1.msra.mxu0 %v272
    %400 = vmatprep.subr.mxu0 0.0
    %401 = vmatpush1.msra.mxu0 %v273
    %402 = vmatprep.subr.mxu0 0.0
    %403 = vmatpush1.msra.mxu0 %v274
    %404 = vmatprep.subr.mxu0 0.0
    %405 = vmatpush1.msra.mxu0 %v275
    %406 = vmatprep.subr.mxu0 0.0
    %407 = vmatpush1.msra.mxu0 %v276
    %408 = vmatprep.subr.mxu0 0.0
    %409 = vmatpush1.msra.mxu0 %v277
    %410 = vmatprep.subr.mxu0 0.0
    %411 = vmatpush1.msra.mxu0 %v278
    %412 = vmatprep.subr.mxu0 0.0
    %413 = vmatpush1.msra.mxu0 %v279
    %414 = vmatprep.subr.mxu0 0.0
    %415 = vmatpush1.msra.mxu0 %v280
    %416 = vmatprep.subr.mxu0 0.0
    %417 = vmatpush1.msra.mxu0 %v281
    %418 = vmatprep.subr.mxu0 0.0
    %419 = vmatpush1.msra.mxu0 %v282
    %420 = vmatprep.subr.mxu0 0.0
    %421 = vmatpush1.msra.mxu0 %v283
    %422 = vmatprep.subr.mxu0 0.0
    %423 = vmatpush1.msra.mxu0 0.0
    %424 = vmatprep.subr.mxu0 0.0
    %425 = vmatpush1.msra.mxu0 0.0
    %426 = vmatprep.subr.mxu0 0.0
    %427 = vmatpush1.msra.mxu0 0.0
    %428 = vmatprep.subr.mxu0 0.0
    %429 = vmatpush1.msra.mxu0 0.0
    %430 = vmatprep.subr.mxu0 0.0
    %431 = vmatpush1.msra.mxu0 0.0
    %432 = vmatprep.subr.mxu0 0.0
    %433 = vmatpush1.msra.mxu0 0.0
    %434 = vmatprep.subr.mxu0 0.0
    %435 = vmatpush1.msra.mxu0 0.0
    %436 = vmatprep.subr.mxu0 0.0
    %437 = vmatpush1.msra.mxu0 0.0
    %438 = vmatprep.subr.mxu0 0.0
    %439 = vmatpush1.msra.mxu0 0.0
    %440 = vmatprep.subr.mxu0 0.0
    %441 = vmatpush1.msra.mxu0 0.0
    %442 = vmatprep.subr.mxu0 0.0
    %443 = vmatpush1.msra.mxu0 0.0
    %444 = vmatprep.subr.mxu0 0.0
    %445 = vmatpush1.msra.mxu0 0.0
    %446 = vmatprep.subr.mxu0 0.0
    %447 = vmatpush1.msra.mxu0 0.0
    %448 = vmatprep.subr.mxu0 0.0
    %449 = vmatpush1.msra.mxu0 0.0
    %450 = vmatprep.subr.mxu0 0.0
    %451 = vmatpush1.msra.mxu0 0.0
    %452 = vmatprep.subr.mxu0 0.0
    %453 = vmatpush1.msra.mxu0 0.0
    %454 = vmatprep.mubr.f32.mxu0 0.0
    %455 = vmatmul.mubr.f32.gmra.mrb[0].mxu0 %v264
    %v456 = vpop.f32.mrb[0].mxu0
    %v457 = vadd.f32 %v372, %v456
    %v458 = vpop.f32.mrb[0].mxu0
    %459 = vmatprep.mubr.f32.mxu0 0.0
    %460 = vmatmul.mubr.f32.gmra.mrb[0].mxu0 %v265
    %v461 = vpop.f32.mrb[0].mxu0
    %v462 = vadd.f32 %v377, %v461
    %v463 = vpop.f32.mrb[0].mxu0
    %464 = vmatprep.mubr.f32.mxu0 0.0
    %465 = vmatmul.mubr.f32.gmra.mrb[0].mxu0 %v266
    %v466 = vpop.f32.mrb[0].mxu0
    %v467 = vadd.f32 %v382, %v466
    %v468 = vpop.f32.mrb[0].mxu0
    %469 = vmatprep.mubr.f32.mxu0 0.0
    %470 = vmatmul.mubr.f32.gmra.mrb[0].mxu0 %v267
    %v471 = vpop.f32.mrb[0].mxu0
    %v472 = vadd.f32 %v387, %v471
    %v473 = vpop.f32.mrb[0].mxu0
    %474 = vdwg.mxu0
    %v475 = vld [vmem:[#allocation2 + $0x2] sm:$0xff]
    %v476 = vld [vmem:[#allocation2 + $0xa] sm:$0xff]
    %v477 = vld [vmem:[#allocation2 + $0x1a] sm:$0xff]
    %v478 = vld [vmem:[#allocation2 + $0x22] sm:$0xff]
    %s479 = scalar_lea.vmem %s4, 256
    %v480 = vld [vmem:[%s479] sm:$0xff]
    %v481 = vld [vmem:[%s479 + $0x8] sm:$0xff]
    %v482 = vld [vmem:[%s479 + $0x10] sm:$0xff]
    %v483 = vld [vmem:[%s479 + $0x18] sm:$0xff]
    %v484 = vld [vmem:[%s479 + $0x20] sm:$0xff]
    %v485 = vld [vmem:[%s479 + $0x28] sm:$0xff]
    %v486 = vld [vmem:[%s479 + $0x30] sm:$0xff]
    %v487 = vld [vmem:[%s479 + $0x38] sm:$0xff]
    %v488 = vld [vmem:[%s479 + $0x40] sm:$0xff]
    %v489 = vld [vmem:[%s479 + $0x48] sm:$0xff]
    %v490 = vld [vmem:[%s479 + $0x50] sm:$0xff]
    %v491 = vld [vmem:[%s479 + $0x58] sm:$0xff]
    %v492 = vld [vmem:[%s479 + $0x60] sm:$0xff]
    %v493 = vld [vmem:[%s479 + $0x68] sm:$0xff]
    %v494 = vld [vmem:[%s479 + $0x70] sm:$0xff]
    %v495 = vld [vmem:[%s479 + $0x78] sm:$0xff]
    %496 = vmatprep.subr.mxu0 0.0
    %497 = vmatpush1.msra.mxu0 %v480
    %498 = vmatprep.subr.mxu0 0.0
    %499 = vmatpush1.msra.mxu0 %v481
    %500 = vmatprep.subr.mxu0 0.0
    %501 = vmatpush1.msra.mxu0 %v482
    %502 = vmatprep.subr.mxu0 0.0
    %503 = vmatpush1.msra.mxu0 %v483
    %504 = vmatprep.subr.mxu0 0.0
    %505 = vmatpush1.msra.mxu0 %v484
    %506 = vmatprep.subr.mxu0 0.0
    %507 = vmatpush1.msra.mxu0 %v485
    %508 = vmatprep.subr.mxu0 0.0
    %509 = vmatpush1.msra.mxu0 %v486
    %510 = vmatprep.subr.mxu0 0.0
    %511 = vmatpush1.msra.mxu0 %v487
    %512 = vmatprep.subr.mxu0 0.0
    %513 = vmatpush1.msra.mxu0 %v488
    %514 = vmatprep.subr.mxu0 0.0
    %515 = vmatpush1.msra.mxu0 %v489
    %516 = vmatprep.subr.mxu0 0.0
    %517 = vmatpush1.msra.mxu0 %v490
    %518 = vmatprep.subr.mxu0 0.0
    %519 = vmatpush1.msra.mxu0 %v491
    %520 = vmatprep.subr.mxu0 0.0
    %521 = vmatpush1.msra.mxu0 %v492
    %522 = vmatprep.subr.mxu0 0.0
    %523 = vmatpush1.msra.mxu0 %v493
    %524 = vmatprep.subr.mxu0 0.0
    %525 = vmatpush1.msra.mxu0 %v494
    %526 = vmatprep.subr.mxu0 0.0
    %527 = vmatpush1.msra.mxu0 %v495
    %528 = vmatprep.subr.mxu0 0.0
    %529 = vmatpush1.msra.mxu0 0.0
    %530 = vmatprep.subr.mxu0 0.0
    %531 = vmatpush1.msra.mxu0 0.0
    %532 = vmatprep.subr.mxu0 0.0
    %533 = vmatpush1.msra.mxu0 0.0
    %534 = vmatprep.subr.mxu0 0.0
    %535 = vmatpush1.msra.mxu0 0.0
    %536 = vmatprep.subr.mxu0 0.0
    %537 = vmatpush1.msra.mxu0 0.0
    %538 = vmatprep.subr.mxu0 0.0
    %539 = vmatpush1.msra.mxu0 0.0
    %540 = vmatprep.subr.mxu0 0.0
    %541 = vmatpush1.msra.mxu0 0.0
    %542 = vmatprep.subr.mxu0 0.0
    %543 = vmatpush1.msra.mxu0 0.0
    %544 = vmatprep.subr.mxu0 0.0
    %545 = vmatpush1.msra.mxu0 0.0
    %546 = vmatprep.subr.mxu0 0.0
    %547 = vmatpush1.msra.mxu0 0.0
    %548 = vmatprep.subr.mxu0 0.0
    %549 = vmatpush1.msra.mxu0 0.0
    %550 = vmatprep.subr.mxu0 0.0
    %551 = vmatpush1.msra.mxu0 0.0
    %552 = vmatprep.subr.mxu0 0.0
    %553 = vmatpush1.msra.mxu0 0.0
    %554 = vmatprep.subr.mxu0 0.0
    %555 = vmatpush1.msra.mxu0 0.0
    %556 = vmatprep.subr.mxu0 0.0
    %557 = vmatpush1.msra.mxu0 0.0
    %558 = vmatprep.subr.mxu0 0.0
    %559 = vmatpush1.msra.mxu0 0.0
    %560 = vmatprep.mubr.f32.mxu0 0.0
    %561 = vmatmul.mubr.f32.gmra.mrb[0].mxu0 %v475
    %v562 = vpop.f32.mrb[0].mxu0
    %v563 = vadd.f32 0.0, %v562
    %v564 = vpop.f32.mrb[0].mxu0
    %565 = vmatprep.mubr.f32.mxu0 0.0
    %566 = vmatmul.mubr.f32.gmra.mrb[0].mxu0 %v476
    %v567 = vpop.f32.mrb[0].mxu0
    %v568 = vadd.f32 0.0, %v567
    %v569 = vpop.f32.mrb[0].mxu0
    %570 = vmatprep.mubr.f32.mxu0 0.0
    %571 = vmatmul.mubr.f32.gmra.mrb[0].mxu0 %v477
    %v572 = vpop.f32.mrb[0].mxu0
    %v573 = vadd.f32 0.0, %v572
    %v574 = vpop.f32.mrb[0].mxu0
    %575 = vmatprep.mubr.f32.mxu0 0.0
    %576 = vmatmul.mubr.f32.gmra.mrb[0].mxu0 %v478
    %v577 = vpop.f32.mrb[0].mxu0
    %v578 = vadd.f32 0.0, %v577
    %v579 = vpop.f32.mrb[0].mxu0
    %580 = vdwg.mxu0
    %v581 = vadd.f32 %v457, %v563
    %v582 = vadd.f32 %v462, %v568
    %v583 = vadd.f32 %v467, %v573
    %v584 = vadd.f32 %v472, %v578
    %vm585 = vcmask 523264
    %v586 = vsel %vm585, %v581, 0.0
    %v587 = vsel %vm585, %v582, 0.0
    %v588 = vadd.f32 %v586, %v587
    %v589 = vsel %vm585, %v583, 0.0
    %v590 = vadd.f32 %v588, %v589
    %v591 = vsel %vm585, %v584, 0.0
    %v592 = vadd.f32 %v590, %v591
    %v593 = vrot.slane %v592, 4
    %v594 = vadd.f32 %v592, %v593
    %v595 = vrot.slane %v594, 2
    %v596 = vadd.f32 %v594, %v595
    %v597 = vrot.slane %v596, 1
    %v598 = vadd.f32 %v596, %v597
    %v599 = vmul.f32 %v581, %v581
    %v600 = vmul.f32 %v582, %v582
    %v601 = vmul.f32 %v583, %v583
    %v602 = vmul.f32 %v584, %v584
    %v603 = vsel %vm585, %v599, 0.0
    %v604 = vsel %vm585, %v600, 0.0
    %v605 = vadd.f32 %v603, %v604
    %v606 = vsel %vm585, %v601, 0.0
    %v607 = vadd.f32 %v605, %v606
    %v608 = vsel %vm585, %v602, 0.0
    %v609 = vadd.f32 %v607, %v608
    %v610 = vrot.slane %v609, 4
    %v611 = vadd.f32 %v609, %v610
    %v612 = vrot.slane %v611, 2
    %v613 = vadd.f32 %v611, %v612
    %v614 = vrot.slane %v613, 1
    %v615 = vadd.f32 %v613, %v614
    %v616 = vld [vmem:[%s5] sm:$0xff]
    %v617 = vld [vmem:[%s5 + $0x8] sm:$0xff]
    %v618 = vld [vmem:[%s5 + $0x10] sm:$0xff]
    %v619 = vld [vmem:[%s5 + $0x18] sm:$0xff]
    %v620 = vld [vmem:[%s5 + $0x20] sm:$0xff]
    %v621 = vld [vmem:[%s5 + $0x28] sm:$0xff]
    %v622 = vld [vmem:[%s5 + $0x30] sm:$0xff]
    %v623 = vld [vmem:[%s5 + $0x38] sm:$0xff]
    %v625 = vsel %vm585, %v598, 0
    %627 = vmatprep.subr.mxu0 0.0
    %628 = vmatpush1.msra.mxu0 %v616
    %629 = vmatprep.subr.mxu0 0.0
    %630 = vmatpush1.msra.mxu0 %v617
    %631 = vmatprep.subr.mxu0 0.0
    %632 = vmatpush1.msra.mxu0 %v618
    %633 = vmatprep.subr.mxu0 0.0
    %634 = vmatpush1.msra.mxu0 %v619
    %635 = vmatprep.subr.mxu0 0.0
    %636 = vmatpush1.msra.mxu0 %v620
    %637 = vmatprep.subr.mxu0 0.0
    %638 = vmatpush1.msra.mxu0 %v621
    %639 = vmatprep.subr.mxu0 0.0
    %640 = vmatpush1.msra.mxu0 %v622
    %641 = vmatprep.subr.mxu0 0.0
    %642 = vmatpush1.msra.mxu0 %v623
    %643 = vmatprep.subr.mxu0 0.0
    %644 = vmatpush1.msra.mxu0 0.0
    %645 = vmatprep.subr.mxu0 0.0
    %646 = vmatpush1.msra.mxu0 0.0
    %647 = vmatprep.subr.mxu0 0.0
    %648 = vmatpush1.msra.mxu0 0.0
    %649 = vmatprep.subr.mxu0 0.0
    %650 = vmatpush1.msra.mxu0 0.0
    %651 = vmatprep.subr.mxu0 0.0
    %652 = vmatpush1.msra.mxu0 0.0
    %653 = vmatprep.subr.mxu0 0.0
    %654 = vmatpush1.msra.mxu0 0.0
    %655 = vmatprep.subr.mxu0 0.0
    %656 = vmatpush1.msra.mxu0 0.0
    %657 = vmatprep.subr.mxu0 0.0
    %658 = vmatpush1.msra.mxu0 0.0
    %659 = vmatprep.subr.mxu0 0.0
    %660 = vmatpush1.msra.mxu0 0.0
    %661 = vmatprep.subr.mxu0 0.0
    %662 = vmatpush1.msra.mxu0 0.0
    %663 = vmatprep.subr.mxu0 0.0
    %664 = vmatpush1.msra.mxu0 0.0
    %665 = vmatprep.subr.mxu0 0.0
    %666 = vmatpush1.msra.mxu0 0.0
    %667 = vmatprep.subr.mxu0 0.0
    %668 = vmatpush1.msra.mxu0 0.0
    %669 = vmatprep.subr.mxu0 0.0
    %670 = vmatpush1.msra.mxu0 0.0
    %671 = vmatprep.subr.mxu0 0.0
    %672 = vmatpush1.msra.mxu0 0.0
    %673 = vmatprep.subr.mxu0 0.0
    %674 = vmatpush1.msra.mxu0 0.0
    %675 = vmatprep.subr.mxu0 0.0
    %676 = vmatpush1.msra.mxu0 0.0
    %677 = vmatprep.subr.mxu0 0.0
    %678 = vmatpush1.msra.mxu0 0.0
    %679 = vmatprep.subr.mxu0 0.0
    %680 = vmatpush1.msra.mxu0 0.0
    %681 = vmatprep.subr.mxu0 0.0
    %682 = vmatpush1.msra.mxu0 0.0
    %683 = vmatprep.subr.mxu0 0.0
    %684 = vmatpush1.msra.mxu0 0.0
    %685 = vmatprep.subr.mxu0 0.0
    %686 = vmatpush1.msra.mxu0 0.0
    %687 = vmatprep.subr.mxu0 0.0
    %688 = vmatpush1.msra.mxu0 0.0
    %689 = vmatprep.subr.mxu0 0.0
    %690 = vmatpush1.msra.mxu0 0.0
    %691 = vmatprep.mubr.f32.mxu0 0.0
    %692 = vmatmul.mubr.f32.gmra.mrb[0].mxu0 %v625
    %v693 = vpop.f32.mrb[0].mxu0
    %v694 = vadd.f32 0.0, %v693
    %v695 = vpop.f32.mrb[0].mxu0
    %696 = vdwg.mxu0
    %v698 = vsel %vm585, %v615, 0
    %700 = vmatprep.subr.mxu0 0.0
    %701 = vmatpush1.msra.mxu0 %v616
    %702 = vmatprep.subr.mxu0 0.0
    %703 = vmatpush1.msra.mxu0 %v617
    %704 = vmatprep.subr.mxu0 0.0
    %705 = vmatpush1.msra.mxu0 %v618
    %706 = vmatprep.subr.mxu0 0.0
    %707 = vmatpush1.msra.mxu0 %v619
    %708 = vmatprep.subr.mxu0 0.0
    %709 = vmatpush1.msra.mxu0 %v620
    %710 = vmatprep.subr.mxu0 0.0
    %711 = vmatpush1.msra.mxu0 %v621
    %712 = vmatprep.subr.mxu0 0.0
    %713 = vmatpush1.msra.mxu0 %v622
    %714 = vmatprep.subr.mxu0 0.0
    %715 = vmatpush1.msra.mxu0 %v623
    %716 = vmatprep.subr.mxu0 0.0
    %717 = vmatpush1.msra.mxu0 0.0
    %718 = vmatprep.subr.mxu0 0.0
    %719 = vmatpush1.msra.mxu0 0.0
    %720 = vmatprep.subr.mxu0 0.0
    %721 = vmatpush1.msra.mxu0 0.0
    %722 = vmatprep.subr.mxu0 0.0
    %723 = vmatpush1.msra.mxu0 0.0
    %724 = vmatprep.subr.mxu0 0.0
    %725 = vmatpush1.msra.mxu0 0.0
    %726 = vmatprep.subr.mxu0 0.0
    %727 = vmatpush1.msra.mxu0 0.0
    %728 = vmatprep.subr.mxu0 0.0
    %729 = vmatpush1.msra.mxu0 0.0
    %730 = vmatprep.subr.mxu0 0.0
    %731 = vmatpush1.msra.mxu0 0.0
    %732 = vmatprep.subr.mxu0 0.0
    %733 = vmatpush1.msra.mxu0 0.0
    %734 = vmatprep.subr.mxu0 0.0
    %735 = vmatpush1.msra.mxu0 0.0
    %736 = vmatprep.subr.mxu0 0.0
    %737 = vmatpush1.msra.mxu0 0.0
    %738 = vmatprep.subr.mxu0 0.0
    %739 = vmatpush1.msra.mxu0 0.0
    %740 = vmatprep.subr.mxu0 0.0
    %741 = vmatpush1.msra.mxu0 0.0
    %742 = vmatprep.subr.mxu0 0.0
    %743 = vmatpush1.msra.mxu0 0.0
    %744 = vmatprep.subr.mxu0 0.0
    %745 = vmatpush1.msra.mxu0 0.0
    %746 = vmatprep.subr.mxu0 0.0
    %747 = vmatpush1.msra.mxu0 0.0
    %748 = vmatprep.subr.mxu0 0.0
    %749 = vmatpush1.msra.mxu0 0.0
    %750 = vmatprep.subr.mxu0 0.0
    %751 = vmatpush1.msra.mxu0 0.0
    %752 = vmatprep.subr.mxu0 0.0
    %753 = vmatpush1.msra.mxu0 0.0
    %754 = vmatprep.subr.mxu0 0.0
    %755 = vmatpush1.msra.mxu0 0.0
    %756 = vmatprep.subr.mxu0 0.0
    %757 = vmatpush1.msra.mxu0 0.0
    %758 = vmatprep.subr.mxu0 0.0
    %759 = vmatpush1.msra.mxu0 0.0
    %760 = vmatprep.subr.mxu0 0.0
    %761 = vmatpush1.msra.mxu0 0.0
    %762 = vmatprep.subr.mxu0 0.0
    %763 = vmatpush1.msra.mxu0 0.0
    %764 = vmatprep.mubr.f32.mxu0 0.0
    %765 = vmatmul.mubr.f32.gmra.mrb[0].mxu0 %v698
    %v766 = vpop.f32.mrb[0].mxu0
    %v767 = vadd.f32 0.0, %v766
    %v768 = vpop.f32.mrb[0].mxu0
    %769 = vdwg.mxu0
    %v770 = vmul.f32 %v694, %v694
    %v771 = vsub.f32 %v767, %v770
    %v772 = vld [vmem:[%s6] sm:$0x1]
    %v773 = vadd.f32 %v771, 1e-05
    %v774 = vrsqrt.pop %v773
    %v775 = vmul.f32 %v772, %v774
    %v777 = vlaneseq
    %v778 = vshrl.u32 %v777, 7
    %v779 = vsub.s32 0, %v778
    %v780 = vrot.slane %v775, %v779
    %v782 = vmul.f32 %v581, %v780
    %v783 = vmul.f32 %v582, %v780
    %v784 = vmul.f32 %v583, %v780
    %v785 = vmul.f32 %v584, %v780
    %v786 = vld [vmem:[%s7] sm:$0x1]
    %v787 = vmul.f32 %v694, %v775
    %v788 = vsub.f32 %v786, %v787
    %v790 = vlaneseq
    %v791 = vshrl.u32 %v790, 7
    %v792 = vsub.s32 0, %v791
    %v793 = vrot.slane %v788, %v792
    %v795 = vadd.f32 %v782, %v793
    %v796 = vadd.f32 %v783, %v793
    %v797 = vadd.f32 %v784, %v793
    %v798 = vadd.f32 %v785, %v793
    %v799 = vmax.f32 %v795, 0.0
    %v800 = vmax.f32 %v796, 0.0
    %v801 = vmax.f32 %v797, 0.0
    %v802 = vmax.f32 %v798, 0.0
    %vm803 = vcmask 516096
    %804 = vst.msk [vmem:[#allocation3] sm:$0x1] %vm803, 0.0
    %805 = vst.msk [vmem:[#allocation3 + $0x18] sm:$0x1] %vm803, 0.0
    %806 = vst.msk [vmem:[#allocation3 + $0x11] sm:$0x1] %vm803, 0.0
    %807 = vst.msk [vmem:[#allocation3 + $0x29] sm:$0x1] %vm803, 0.0
    %808 = vst.msk [vmem:[#allocation3 + $0x1] sm:$0xff] %vm585, %v799
    %809 = vst.msk [vmem:[#allocation3 + $0x9] sm:$0xff] %vm585, %v800
    %810 = vst.msk [vmem:[#allocation3 + $0x19] sm:$0xff] %vm585, %v801
    %811 = vst.msk [vmem:[#allocation3 + $0x21] sm:$0xff] %vm585, %v802
    %v812 = vld [vmem:[#allocation3] sm:$0xff]
    %v813 = vld [vmem:[#allocation3 + $0x8] sm:$0xff]
    %v814 = vld [vmem:[#allocation3 + $0x18] sm:$0xff]
    %v815 = vld [vmem:[#allocation3 + $0x20] sm:$0xff]
    %v816 = vld [vmem:[%s8] sm:$0xff]
    %v817 = vld [vmem:[%s8 + $0x8] sm:$0xff]
    %v818 = vld [vmem:[%s8 + $0x10] sm:$0xff]
    %v819 = vld [vmem:[%s8 + $0x18] sm:$0xff]
    %v820 = vld [vmem:[%s8 + $0x20] sm:$0xff]
    %v821 = vld [vmem:[%s8 + $0x28] sm:$0xff]
    %v822 = vld [vmem:[%s8 + $0x30] sm:$0xff]
    %v823 = vld [vmem:[%s8 + $0x38] sm:$0xff]
    %v824 = vld [vmem:[#allocation3 + $0x1] sm:$0xff]
    %v825 = vld [vmem:[#allocation3 + $0x9] sm:$0xff]
    %v826 = vld [vmem:[#allocation3 + $0x19] sm:$0xff]
    %v827 = vld [vmem:[#allocation3 + $0x21] sm:$0xff]
    %s828 = scalar_lea.vmem %s8, 64
    %v829 = vld [vmem:[%s828] sm:$0xff]
    %v830 = vld [vmem:[%s828 + $0x8] sm:$0xff]
    %v831 = vld [vmem:[%s828 + $0x10] sm:$0xff]
    %v832 = vld [vmem:[%s828 + $0x18] sm:$0xff]
    %v833 = vld [vmem:[%s828 + $0x20] sm:$0xff]
    %v834 = vld [vmem:[%s828 + $0x28] sm:$0xff]
    %v835 = vld [vmem:[%s828 + $0x30] sm:$0xff]
    %v836 = vld [vmem:[%s828 + $0x38] sm:$0xff]
    %v838 = vsel %vm585, %v824, 0
    %v841 = vsel %vm585, %v825, 0
    %v844 = vsel %vm585, %v826, 0
    %v847 = vsel %vm585, %v827, 0
    %849 = vmatprep.subr.mxu0 0.0
    %850 = vmatpush1.msra.mxu0 %v829
    %851 = vmatprep.subr.mxu0 0.0
    %852 = vmatpush1.msra.mxu0 %v830
    %853 = vmatprep.subr.mxu0 0.0
    %854 = vmatpush1.msra.mxu0 %v831
    %855 = vmatprep.subr.mxu0 0.0
    %856 = vmatpush1.msra.mxu0 %v832
    %857 = vmatprep.subr.mxu0 0.0
    %858 = vmatpush1.msra.mxu0 %v833
    %859 = vmatprep.subr.mxu0 0.0
    %860 = vmatpush1.msra.mxu0 %v834
    %861 = vmatprep.subr.mxu0 0.0
    %862 = vmatpush1.msra.mxu0 %v835
    %863 = vmatprep.subr.mxu0 0.0
    %864 = vmatpush1.msra.mxu0 %v836
    %865 = vmatprep.subr.mxu0 0.0
    %866 = vmatpush1.msra.mxu0 0.0
    %867 = vmatprep.subr.mxu0 0.0
    %868 = vmatpush1.msra.mxu0 0.0
    %869 = vmatprep.subr.mxu0 0.0
    %870 = vmatpush1.msra.mxu0 0.0
    %871 = vmatprep.subr.mxu0 0.0
    %872 = vmatpush1.msra.mxu0 0.0
    %873 = vmatprep.subr.mxu0 0.0
    %874 = vmatpush1.msra.mxu0 0.0
    %875 = vmatprep.subr.mxu0 0.0
    %876 = vmatpush1.msra.mxu0 0.0
    %877 = vmatprep.subr.mxu0 0.0
    %878 = vmatpush1.msra.mxu0 0.0
    %879 = vmatprep.subr.mxu0 0.0
    %880 = vmatpush1.msra.mxu0 0.0
    %881 = vmatprep.subr.mxu0 0.0
    %882 = vmatpush1.msra.mxu0 0.0
    %883 = vmatprep.subr.mxu0 0.0
    %884 = vmatpush1.msra.mxu0 0.0
    %885 = vmatprep.subr.mxu0 0.0
    %886 = vmatpush1.msra.mxu0 0.0
    %887 = vmatprep.subr.mxu0 0.0
    %888 = vmatpush1.msra.mxu0 0.0
    %889 = vmatprep.subr.mxu0 0.0
    %890 = vmatpush1.msra.mxu0 0.0
    %891 = vmatprep.subr.mxu0 0.0
    %892 = vmatpush1.msra.mxu0 0.0
    %893 = vmatprep.subr.mxu0 0.0
    %894 = vmatpush1.msra.mxu0 0.0
    %895 = vmatprep.subr.mxu0 0.0
    %896 = vmatpush1.msra.mxu0 0.0
    %897 = vmatprep.subr.mxu0 0.0
    %898 = vmatpush1.msra.mxu0 0.0
    %899 = vmatprep.subr.mxu0 0.0
    %900 = vmatpush1.msra.mxu0 0.0
    %901 = vmatprep.subr.mxu0 0.0
    %902 = vmatpush1.msra.mxu0 0.0
    %903 = vmatprep.subr.mxu0 0.0
    %904 = vmatpush1.msra.mxu0 0.0
    %905 = vmatprep.subr.mxu0 0.0
    %906 = vmatpush1.msra.mxu0 0.0
    %907 = vmatprep.subr.mxu0 0.0
    %908 = vmatpush1.msra.mxu0 0.0
    %909 = vmatprep.subr.mxu0 0.0
    %910 = vmatpush1.msra.mxu0 0.0
    %911 = vmatprep.subr.mxu0 0.0
    %912 = vmatpush1.msra.mxu0 0.0
    %913 = vmatprep.mubr.f32.mxu0 0.0
    %914 = vmatmul.mubr.f32.gmra.mrb[0].mxu0 %v838
    %v915 = vpop.f32.mrb[0].mxu0
    %v916 = vadd.f32 0.0, %v915
    %v917 = vpop.f32.mrb[0].mxu0
    %918 = vmatprep.mubr.f32.mxu0 0.0
    %919 = vmatmul.mubr.f32.gmra.mrb[0].mxu0 %v841
    %v920 = vpop.f32.mrb[0].mxu0
    %v921 = vadd.f32 0.0, %v920
    %v922 = vpop.f32.mrb[0].mxu0
    %923 = vmatprep.mubr.f32.mxu0 0.0
    %924 = vmatmul.mubr.f32.gmra.mrb[0].mxu0 %v844
    %v925 = vpop.f32.mrb[0].mxu0
    %v926 = vadd.f32 0.0, %v925
    %v927 = vpop.f32.mrb[0].mxu0
    %928 = vmatprep.mubr.f32.mxu0 0.0
    %929 = vmatmul.mubr.f32.gmra.mrb[0].mxu0 %v847
    %v930 = vpop.f32.mrb[0].mxu0
    %v931 = vadd.f32 0.0, %v930
    %v932 = vpop.f32.mrb[0].mxu0
    %933 = vdwg.mxu0
    %v935 = vsel %vm585, %v812, 0
    %v938 = vsel %vm585, %v813, 0
    %v941 = vsel %vm585, %v814, 0
    %v944 = vsel %vm585, %v815, 0
    %946 = vmatprep.subr.mxu0 0.0
    %947 = vmatpush1.msra.mxu0 %v816
    %948 = vmatprep.subr.mxu0 0.0
    %949 = vmatpush1.msra.mxu0 %v817
    %950 = vmatprep.subr.mxu0 0.0
    %951 = vmatpush1.msra.mxu0 %v818
    %952 = vmatprep.subr.mxu0 0.0
    %953 = vmatpush1.msra.mxu0 %v819
    %954 = vmatprep.subr.mxu0 0.0
    %955 = vmatpush1.msra.mxu0 %v820
    %956 = vmatprep.subr.mxu0 0.0
    %957 = vmatpush1.msra.mxu0 %v821
    %958 = vmatprep.subr.mxu0 0.0
    %959 = vmatpush1.msra.mxu0 %v822
    %960 = vmatprep.subr.mxu0 0.0
    %961 = vmatpush1.msra.mxu0 %v823
    %962 = vmatprep.subr.mxu0 0.0
    %963 = vmatpush1.msra.mxu0 0.0
    %964 = vmatprep.subr.mxu0 0.0
    %965 = vmatpush1.msra.mxu0 0.0
    %966 = vmatprep.subr.mxu0 0.0
    %967 = vmatpush1.msra.mxu0 0.0
    %968 = vmatprep.subr.mxu0 0.0
    %969 = vmatpush1.msra.mxu0 0.0
    %970 = vmatprep.subr.mxu0 0.0
    %971 = vmatpush1.msra.mxu0 0.0
    %972 = vmatprep.subr.mxu0 0.0
    %973 = vmatpush1.msra.mxu0 0.0
    %974 = vmatprep.subr.mxu0 0.0
    %975 = vmatpush1.msra.mxu0 0.0
    %976 = vmatprep.subr.mxu0 0.0
    %977 = vmatpush1.msra.mxu0 0.0
    %978 = vmatprep.subr.mxu0 0.0
    %979 = vmatpush1.msra.mxu0 0.0
    %980 = vmatprep.subr.mxu0 0.0
    %981 = vmatpush1.msra.mxu0 0.0
    %982 = vmatprep.subr.mxu0 0.0
    %983 = vmatpush1.msra.mxu0 0.0
    %984 = vmatprep.subr.mxu0 0.0
    %985 = vmatpush1.msra.mxu0 0.0
    %986 = vmatprep.subr.mxu0 0.0
    %987 = vmatpush1.msra.mxu0 0.0
    %988 = vmatprep.subr.mxu0 0.0
    %989 = vmatpush1.msra.mxu0 0.0
    %990 = vmatprep.subr.mxu0 0.0
    %991 = vmatpush1.msra.mxu0 0.0
    %992 = vmatprep.subr.mxu0 0.0
    %993 = vmatpush1.msra.mxu0 0.0
    %994 = vmatprep.subr.mxu0 0.0
    %995 = vmatpush1.msra.mxu0 0.0
    %996 = vmatprep.subr.mxu0 0.0
    %997 = vmatpush1.msra.mxu0 0.0
    %998 = vmatprep.subr.mxu0 0.0
    %999 = vmatpush1.msra.mxu0 0.0
    %1000 = vmatprep.subr.mxu0 0.0
    %1001 = vmatpush1.msra.mxu0 0.0
    %1002 = vmatprep.subr.mxu0 0.0
    %1003 = vmatpush1.msra.mxu0 0.0
    %1004 = vmatprep.subr.mxu0 0.0
    %1005 = vmatpush1.msra.mxu0 0.0
    %1006 = vmatprep.subr.mxu0 0.0
    %1007 = vmatpush1.msra.mxu0 0.0
    %1008 = vmatprep.subr.mxu0 0.0
    %1009 = vmatpush1.msra.mxu0 0.0
    %1010 = vmatprep.mubr.f32.mxu0 0.0
    %1011 = vmatmul.mubr.f32.gmra.mrb[0].mxu0 %v935
    %v1012 = vpop.f32.mrb[0].mxu0
    %v1013 = vadd.f32 %v916, %v1012
    %v1014 = vpop.f32.mrb[0].mxu0
    %1015 = vmatprep.mubr.f32.mxu0 0.0
    %1016 = vmatmul.mubr.f32.gmra.mrb[0].mxu0 %v938
    %v1017 = vpop.f32.mrb[0].mxu0
    %v1018 = vadd.f32 %v921, %v1017
    %v1019 = vpop.f32.mrb[0].mxu0
    %1020 = vmatprep.mubr.f32.mxu0 0.0
    %1021 = vmatmul.mubr.f32.gmra.mrb[0].mxu0 %v941
    %v1022 = vpop.f32.mrb[0].mxu0
    %v1023 = vadd.f32 %v926, %v1022
    %v1024 = vpop.f32.mrb[0].mxu0
    %1025 = vmatprep.mubr.f32.mxu0 0.0
    %1026 = vmatmul.mubr.f32.gmra.mrb[0].mxu0 %v944
    %v1027 = vpop.f32.mrb[0].mxu0
    %v1028 = vadd.f32 %v931, %v1027
    %v1029 = vpop.f32.mrb[0].mxu0
    %1030 = vdwg.mxu0
    %v1031 = vld [vmem:[#allocation3 + $0x2] sm:$0xff]
    %v1032 = vld [vmem:[#allocation3 + $0xa] sm:$0xff]
    %v1033 = vld [vmem:[#allocation3 + $0x1a] sm:$0xff]
    %v1034 = vld [vmem:[#allocation3 + $0x22] sm:$0xff]
    %s1035 = scalar_lea.vmem %s8, 128
    %v1036 = vld [vmem:[%s1035] sm:$0xff]
    %v1037 = vld [vmem:[%s1035 + $0x8] sm:$0xff]
    %v1038 = vld [vmem:[%s1035 + $0x10] sm:$0xff]
    %v1039 = vld [vmem:[%s1035 + $0x18] sm:$0xff]
    %v1040 = vld [vmem:[%s1035 + $0x20] sm:$0xff]
    %v1041 = vld [vmem:[%s1035 + $0x28] sm:$0xff]
    %v1042 = vld [vmem:[%s1035 + $0x30] sm:$0xff]
    %v1043 = vld [vmem:[%s1035 + $0x38] sm:$0xff]
    %v1045 = vsel %vm585, %v1031, 0
    %v1048 = vsel %vm585, %v1032, 0
    %v1051 = vsel %vm585, %v1033, 0
    %v1054 = vsel %vm585, %v1034, 0
    %1056 = vmatprep.subr.mxu0 0.0
    %1057 = vmatpush1.msra.mxu0 %v1036
    %1058 = vmatprep.subr.mxu0 0.0
    %1059 = vmatpush1.msra.mxu0 %v1037
    %1060 = vmatprep.subr.mxu0 0.0
    %1061 = vmatpush1.msra.mxu0 %v1038
    %1062 = vmatprep.subr.mxu0 0.0
    %1063 = vmatpush1.msra.mxu0 %v1039
    %1064 = vmatprep.subr.mxu0 0.0
    %1065 = vmatpush1.msra.mxu0 %v1040
    %1066 = vmatprep.subr.mxu0 0.0
    %1067 = vmatpush1.msra.mxu0 %v1041
    %1068 = vmatprep.subr.mxu0 0.0
    %1069 = vmatpush1.msra.mxu0 %v1042
    %1070 = vmatprep.subr.mxu0 0.0
    %1071 = vmatpush1.msra.mxu0 %v1043
    %1072 = vmatprep.subr.mxu0 0.0
    %1073 = vmatpush1.msra.mxu0 0.0
    %1074 = vmatprep.subr.mxu0 0.0
    %1075 = vmatpush1.msra.mxu0 0.0
    %1076 = vmatprep.subr.mxu0 0.0
    %1077 = vmatpush1.msra.mxu0 0.0
    %1078 = vmatprep.subr.mxu0 0.0
    %1079 = vmatpush1.msra.mxu0 0.0
    %1080 = vmatprep.subr.mxu0 0.0
    %1081 = vmatpush1.msra.mxu0 0.0
    %1082 = vmatprep.subr.mxu0 0.0
    %1083 = vmatpush1.msra.mxu0 0.0
    %1084 = vmatprep.subr.mxu0 0.0
    %1085 = vmatpush1.msra.mxu0 0.0
    %1086 = vmatprep.subr.mxu0 0.0
    %1087 = vmatpush1.msra.mxu0 0.0
    %1088 = vmatprep.subr.mxu0 0.0
    %1089 = vmatpush1.msra.mxu0 0.0
    %1090 = vmatprep.subr.mxu0 0.0
    %1091 = vmatpush1.msra.mxu0 0.0
    %1092 = vmatprep.subr.mxu0 0.0
    %1093 = vmatpush1.msra.mxu0 0.0
    %1094 = vmatprep.subr.mxu0 0.0
    %1095 = vmatpush1.msra.mxu0 0.0
    %1096 = vmatprep.subr.mxu0 0.0
    %1097 = vmatpush1.msra.mxu0 0.0
    %1098 = vmatprep.subr.mxu0 0.0
    %1099 = vmatpush1.msra.mxu0 0.0
    %1100 = vmatprep.subr.mxu0 0.0
    %1101 = vmatpush1.msra.mxu0 0.0
    %1102 = vmatprep.subr.mxu0 0.0
    %1103 = vmatpush1.msra.mxu0 0.0
    %1104 = vmatprep.subr.mxu0 0.0
    %1105 = vmatpush1.msra.mxu0 0.0
    %1106 = vmatprep.subr.mxu0 0.0
    %1107 = vmatpush1.msra.mxu0 0.0
    %1108 = vmatprep.subr.mxu0 0.0
    %1109 = vmatpush1.msra.mxu0 0.0
    %1110 = vmatprep.subr.mxu0 0.0
    %1111 = vmatpush1.msra.mxu0 0.0
    %1112 = vmatprep.subr.mxu0 0.0
    %1113 = vmatpush1.msra.mxu0 0.0
    %1114 = vmatprep.subr.mxu0 0.0
    %1115 = vmatpush1.msra.mxu0 0.0
    %1116 = vmatprep.subr.mxu0 0.0
    %1117 = vmatpush1.msra.mxu0 0.0
    %1118 = vmatprep.subr.mxu0 0.0
    %1119 = vmatpush1.msra.mxu0 0.0
    %1120 = vmatprep.mubr.f32.mxu0 0.0
    %1121 = vmatmul.mubr.f32.gmra.mrb[0].mxu0 %v1045
    %v1122 = vpop.f32.mrb[0].mxu0
    %v1123 = vadd.f32 0.0, %v1122
    %v1124 = vpop.f32.mrb[0].mxu0
    %1125 = vmatprep.mubr.f32.mxu0 0.0
    %1126 = vmatmul.mubr.f32.gmra.mrb[0].mxu0 %v1048
    %v1127 = vpop.f32.mrb[0].mxu0
    %v1128 = vadd.f32 0.0, %v1127
    %v1129 = vpop.f32.mrb[0].mxu0
    %1130 = vmatprep.mubr.f32.mxu0 0.0
    %1131 = vmatmul.mubr.f32.gmra.mrb[0].mxu0 %v1051
    %v1132 = vpop.f32.mrb[0].mxu0
    %v1133 = vadd.f32 0.0, %v1132
    %v1134 = vpop.f32.mrb[0].mxu0
    %1135 = vmatprep.mubr.f32.mxu0 0.0
    %1136 = vmatmul.mubr.f32.gmra.mrb[0].mxu0 %v1054
    %v1137 = vpop.f32.mrb[0].mxu0
    %v1138 = vadd.f32 0.0, %v1137
    %v1139 = vpop.f32.mrb[0].mxu0
    %1140 = vdwg.mxu0
    %v1141 = vadd.f32 %v1013, %v1123
    %v1142 = vadd.f32 %v1018, %v1128
    %v1143 = vadd.f32 %v1023, %v1133
    %v1144 = vadd.f32 %v1028, %v1138
    %v1145 = vadd.f32 %v1141, %v1142
    %v1146 = vadd.f32 %v1145, %v1143
    %v1147 = vadd.f32 %v1146, %v1144
    %v1148 = vrot.slane %v1147, 4
    %v1149 = vadd.f32 %v1147, %v1148
    %v1150 = vrot.slane %v1149, 2
    %v1151 = vadd.f32 %v1149, %v1150
    %v1152 = vrot.slane %v1151, 1
    %v1153 = vadd.f32 %v1151, %v1152
    %v1154 = vmul.f32 %v1141, %v1141
    %v1155 = vmul.f32 %v1142, %v1142
    %v1156 = vmul.f32 %v1143, %v1143
    %v1157 = vmul.f32 %v1144, %v1144
    %v1158 = vadd.f32 %v1154, %v1155
    %v1159 = vadd.f32 %v1158, %v1156
    %v1160 = vadd.f32 %v1159, %v1157
    %v1161 = vrot.slane %v1160, 4
    %v1162 = vadd.f32 %v1160, %v1161
    %v1163 = vrot.slane %v1162, 2
    %v1164 = vadd.f32 %v1162, %v1163
    %v1165 = vrot.slane %v1164, 1
    %v1166 = vadd.f32 %v1164, %v1165
    %v1167 = vld [vmem:[%s9] sm:$0xff]
    %v1168 = vld [vmem:[%s9 + $0x8] sm:$0xff]
    %v1169 = vld [vmem:[%s9 + $0x10] sm:$0xff]
    %v1170 = vld [vmem:[%s9 + $0x18] sm:$0xff]
    %v1171 = vld [vmem:[%s9 + $0x20] sm:$0xff]
    %v1172 = vld [vmem:[%s9 + $0x28] sm:$0xff]
    %v1173 = vld [vmem:[%s9 + $0x30] sm:$0xff]
    %v1174 = vld [vmem:[%s9 + $0x38] sm:$0xff]
    %v1175 = vld [vmem:[%s9 + $0x40] sm:$0xff]
    %v1176 = vld [vmem:[%s9 + $0x48] sm:$0xff]
    %v1177 = vld [vmem:[%s9 + $0x50] sm:$0xff]
    %v1178 = vld [vmem:[%s9 + $0x58] sm:$0xff]
    %v1179 = vld [vmem:[%s9 + $0x60] sm:$0xff]
    %v1180 = vld [vmem:[%s9 + $0x68] sm:$0xff]
    %v1181 = vld [vmem:[%s9 + $0x70] sm:$0xff]
    %v1182 = vld [vmem:[%s9 + $0x78] sm:$0xff]
    %1183 = vmatprep.subr.mxu0 0.0
    %1184 = vmatpush1.msra.mxu0 %v1167
    %1185 = vmatprep.subr.mxu0 0.0
    %1186 = vmatpush1.msra.mxu0 %v1168
    %1187 = vmatprep.subr.mxu0 0.0
    %1188 = vmatpush1.msra.mxu0 %v1169
    %1189 = vmatprep.subr.mxu0 0.0
    %1190 = vmatpush1.msra.mxu0 %v1170
    %1191 = vmatprep.subr.mxu0 0.0
    %1192 = vmatpush1.msra.mxu0 %v1171
    %1193 = vmatprep.subr.mxu0 0.0
    %1194 = vmatpush1.msra.mxu0 %v1172
    %1195 = vmatprep.subr.mxu0 0.0
    %1196 = vmatpush1.msra.mxu0 %v1173
    %1197 = vmatprep.subr.mxu0 0.0
    %1198 = vmatpush1.msra.mxu0 %v1174
    %1199 = vmatprep.subr.mxu0 0.0
    %1200 = vmatpush1.msra.mxu0 %v1175
    %1201 = vmatprep.subr.mxu0 0.0
    %1202 = vmatpush1.msra.mxu0 %v1176
    %1203 = vmatprep.subr.mxu0 0.0
    %1204 = vmatpush1.msra.mxu0 %v1177
    %1205 = vmatprep.subr.mxu0 0.0
    %1206 = vmatpush1.msra.mxu0 %v1178
    %1207 = vmatprep.subr.mxu0 0.0
    %1208 = vmatpush1.msra.mxu0 %v1179
    %1209 = vmatprep.subr.mxu0 0.0
    %1210 = vmatpush1.msra.mxu0 %v1180
    %1211 = vmatprep.subr.mxu0 0.0
    %1212 = vmatpush1.msra.mxu0 %v1181
    %1213 = vmatprep.subr.mxu0 0.0
    %1214 = vmatpush1.msra.mxu0 %v1182
    %1215 = vmatprep.subr.mxu0 0.0
    %1216 = vmatpush1.msra.mxu0 0.0
    %1217 = vmatprep.subr.mxu0 0.0
    %1218 = vmatpush1.msra.mxu0 0.0
    %1219 = vmatprep.subr.mxu0 0.0
    %1220 = vmatpush1.msra.mxu0 0.0
    %1221 = vmatprep.subr.mxu0 0.0
    %1222 = vmatpush1.msra.mxu0 0.0
    %1223 = vmatprep.subr.mxu0 0.0
    %1224 = vmatpush1.msra.mxu0 0.0
    %1225 = vmatprep.subr.mxu0 0.0
    %1226 = vmatpush1.msra.mxu0 0.0
    %1227 = vmatprep.subr.mxu0 0.0
    %1228 = vmatpush1.msra.mxu0 0.0
    %1229 = vmatprep.subr.mxu0 0.0
    %1230 = vmatpush1.msra.mxu0 0.0
    %1231 = vmatprep.subr.mxu0 0.0
    %1232 = vmatpush1.msra.mxu0 0.0
    %1233 = vmatprep.subr.mxu0 0.0
    %1234 = vmatpush1.msra.mxu0 0.0
    %1235 = vmatprep.subr.mxu0 0.0
    %1236 = vmatpush1.msra.mxu0 0.0
    %1237 = vmatprep.subr.mxu0 0.0
    %1238 = vmatpush1.msra.mxu0 0.0
    %1239 = vmatprep.subr.mxu0 0.0
    %1240 = vmatpush1.msra.mxu0 0.0
    %1241 = vmatprep.subr.mxu0 0.0
    %1242 = vmatpush1.msra.mxu0 0.0
    %1243 = vmatprep.subr.mxu0 0.0
    %1244 = vmatpush1.msra.mxu0 0.0
    %1245 = vmatprep.subr.mxu0 0.0
    %1246 = vmatpush1.msra.mxu0 0.0
    %1247 = vmatprep.mubr.f32.mxu0 0.0
    %1248 = vmatmul.mubr.f32.gmra.mrb[0].mxu0 %v1153
    %v1249 = vpop.f32.mrb[0].mxu0
    %v1250 = vadd.f32 0.0, %v1249
    %v1251 = vpop.f32.mrb[0].mxu0
    %1252 = vdwg.mxu0
    %1253 = vmatprep.subr.mxu0 0.0
    %1254 = vmatpush1.msra.mxu0 %v1167
    %1255 = vmatprep.subr.mxu0 0.0
    %1256 = vmatpush1.msra.mxu0 %v1168
    %1257 = vmatprep.subr.mxu0 0.0
    %1258 = vmatpush1.msra.mxu0 %v1169
    %1259 = vmatprep.subr.mxu0 0.0
    %1260 = vmatpush1.msra.mxu0 %v1170
    %1261 = vmatprep.subr.mxu0 0.0
    %1262 = vmatpush1.msra.mxu0 %v1171
    %1263 = vmatprep.subr.mxu0 0.0
    %1264 = vmatpush1.msra.mxu0 %v1172
    %1265 = vmatprep.subr.mxu0 0.0
    %1266 = vmatpush1.msra.mxu0 %v1173
    %1267 = vmatprep.subr.mxu0 0.0
    %1268 = vmatpush1.msra.mxu0 %v1174
    %1269 = vmatprep.subr.mxu0 0.0
    %1270 = vmatpush1.msra.mxu0 %v1175
    %1271 = vmatprep.subr.mxu0 0.0
    %1272 = vmatpush1.msra.mxu0 %v1176
    %1273 = vmatprep.subr.mxu0 0.0
    %1274 = vmatpush1.msra.mxu0 %v1177
    %1275 = vmatprep.subr.mxu0 0.0
    %1276 = vmatpush1.msra.mxu0 %v1178
    %1277 = vmatprep.subr.mxu0 0.0
    %1278 = vmatpush1.msra.mxu0 %v1179
    %1279 = vmatprep.subr.mxu0 0.0
    %1280 = vmatpush1.msra.mxu0 %v1180
    %1281 = vmatprep.subr.mxu0 0.0
    %1282 = vmatpush1.msra.mxu0 %v1181
    %1283 = vmatprep.subr.mxu0 0.0
    %1284 = vmatpush1.msra.mxu0 %v1182
    %1285 = vmatprep.subr.mxu0 0.0
    %1286 = vmatpush1.msra.mxu0 0.0
    %1287 = vmatprep.subr.mxu0 0.0
    %1288 = vmatpush1.msra.mxu0 0.0
    %1289 = vmatprep.subr.mxu0 0.0
    %1290 = vmatpush1.msra.mxu0 0.0
    %1291 = vmatprep.subr.mxu0 0.0
    %1292 = vmatpush1.msra.mxu0 0.0
    %1293 = vmatprep.subr.mxu0 0.0
    %1294 = vmatpush1.msra.mxu0 0.0
    %1295 = vmatprep.subr.mxu0 0.0
    %1296 = vmatpush1.msra.mxu0 0.0
    %1297 = vmatprep.subr.mxu0 0.0
    %1298 = vmatpush1.msra.mxu0 0.0
    %1299 = vmatprep.subr.mxu0 0.0
    %1300 = vmatpush1.msra.mxu0 0.0
    %1301 = vmatprep.subr.mxu0 0.0
    %1302 = vmatpush1.msra.mxu0 0.0
    %1303 = vmatprep.subr.mxu0 0.0
    %1304 = vmatpush1.msra.mxu0 0.0
    %1305 = vmatprep.subr.mxu0 0.0
    %1306 = vmatpush1.msra.mxu0 0.0
    %1307 = vmatprep.subr.mxu0 0.0
    %1308 = vmatpush1.msra.mxu0 0.0
    %1309 = vmatprep.subr.mxu0 0.0
    %1310 = vmatpush1.msra.mxu0 0.0
    %1311 = vmatprep.subr.mxu0 0.0
    %1312 = vmatpush1.msra.mxu0 0.0
    %1313 = vmatprep.subr.mxu0 0.0
    %1314 = vmatpush1.msra.mxu0 0.0
    %1315 = vmatprep.subr.mxu0 0.0
    %1316 = vmatpush1.msra.mxu0 0.0
    %1317 = vmatprep.mubr.f32.mxu0 0.0
    %1318 = vmatmul.mubr.f32.gmra.mrb[0].mxu0 %v1166
    %v1319 = vpop.f32.mrb[0].mxu0
    %v1320 = vadd.f32 0.0, %v1319
    %v1321 = vpop.f32.mrb[0].mxu0
    %1322 = vdwg.mxu0
    %v1323 = vmul.f32 %v1250, %v1250
    %v1324 = vsub.f32 %v1320, %v1323
    %v1325 = vld [vmem:[%s10] sm:$0x1]
    %v1326 = vadd.f32 %v1324, 1e-05
    %v1327 = vrsqrt.pop %v1326
    %v1328 = vmul.f32 %v1325, %v1327
    %v1330 = vlaneseq
    %v1331 = vshrl.u32 %v1330, 7
    %v1332 = vsub.s32 0, %v1331
    %v1333 = vrot.slane %v1328, %v1332
    %v1335 = vmul.f32 %v1141, %v1333
    %v1336 = vmul.f32 %v1142, %v1333
    %v1337 = vmul.f32 %v1143, %v1333
    %v1338 = vmul.f32 %v1144, %v1333
    %v1339 = vld [vmem:[%s11] sm:$0x1]
    %v1340 = vmul.f32 %v1250, %v1328
    %v1341 = vsub.f32 %v1339, %v1340
    %v1343 = vlaneseq
    %v1344 = vshrl.u32 %v1343, 7
    %v1345 = vsub.s32 0, %v1344
    %v1346 = vrot.slane %v1341, %v1345
    %v1348 = vadd.f32 %v1335, %v1346
    %v1349 = vadd.f32 %v1336, %v1346
    %v1350 = vadd.f32 %v1337, %v1346
    %v1351 = vadd.f32 %v1338, %v1346
    %v1352 = vmax.f32 %v1348, 0.0
    %v1353 = vmax.f32 %v1349, 0.0
    %v1354 = vmax.f32 %v1350, 0.0
    %v1355 = vmax.f32 %v1351, 0.0
    %1356 = vst [vmem:[#allocation4] sm:$0xff] %v1352
    %1357 = vst [vmem:[#allocation4 + $0x8] sm:$0xff] %v1353
    %1358 = vst [vmem:[#allocation4 + $0x10] sm:$0xff] %v1354
    %1359 = vst [vmem:[#allocation4 + $0x18] sm:$0xff] %v1355
    // Predicated region
    $region50: #{tpu_custom_call.1} parent=1 // pred_check
      _
    $region51: #{tpu_custom_call.1} parent=1 // pred_check_branch
      %1361 = sbr.rel (0) target = $region53
    $region52: #{tpu_custom_call.1} parent=1 // pred_region
      %s1363 = ssub.s32 512, 512
      %1364 = vsyncadd [#allocation5], %s1363
      %s1365 = sshll.u32 [#allocation4], 4
      %s1366 = int_to_ptr.vmem [resolvable:$true] %s1365
      %1371 = dma.vmem_to_hbm [thread:$0]  %s1366, 512, %s12, [#allocation5], 128, 128, 8
    $region53: #{tpu_custom_call.1} parent=1 // pred_fallthru
      _
    // Predicated region
    $region54: #{tpu_custom_call.1} parent=1 // pred_check
      _
    $region55: #{tpu_custom_call.1} parent=1 // pred_check_branch
      %1373 = sbr.rel (0) target = $region57
    $region56: #{tpu_custom_call.1} parent=1 // pred_region
      %1374 = dma.done [#allocation5], 512
    $region57: #{tpu_custom_call.1} parent=1 // pred_fallthru
      _
    %1375 = vsyncpa [#allocation5], 1

</llo_original>
